<compile_context>
chip_gen: v6e
topology: v6e:2x2x1
jax: 0.10.0
libtpu: 0.0.40
codegen_flags: <defaults>
</compile_context>

<pallas_src>
import functools

import jax
import jax.numpy as jnp
from jax.experimental import pallas as pl
from jax.experimental.pallas import tpu as pltpu


def _tpu_vmem_capacity_bytes():
    """Per-TensorCore VMEM capacity; conservative default if the query fails."""
    try:
        return int(pltpu.get_tpu_info().vmem_capacity_bytes)
    except Exception:
        return 64 * 1024 * 1024  # v7x has the smallest VMEM (64 MiB / TC)


# ----------------------------------------------------------------------------
# Single-pass fast path: whole (Cin, S) instance resident, one HBM pass.
# ----------------------------------------------------------------------------
def _fused_kernel(x_ref, w_ref, g_ref, b_ref, o_ref, y_ref, *, eps, inv_s):
    # x_ref: (Cin, S)   w_ref: (Cout, Cin)   g/b: (Cout, 1)   y_ref: f32 scratch
    # 1x1x1 Conv3d == channel matmul on the MXU (lane axis = spatial).
    y_ref[...] = jnp.dot(w_ref[...], x_ref[...], preferred_element_type=jnp.float32)
    mean = jnp.sum(y_ref[...], axis=1, keepdims=True) * inv_s
    # Centered variance: no E[y^2] - mean^2 cancellation on this path.
    y_ref[...] = y_ref[...] - mean
    var = jnp.sum(y_ref[...] * y_ref[...], axis=1, keepdims=True) * inv_s
    scale = g_ref[...] * jax.lax.rsqrt(var + eps)      # EUP slot -- effectively free
    o_ref[...] = jnp.maximum(y_ref[...] * scale + b_ref[...], 0.0).astype(o_ref.dtype)


# ----------------------------------------------------------------------------
# Streaming fallback, pass 1: partial per-(instance, chunk, channel) sum/sumsq
# of y = W @ x (conv bias cancels in the mean subtraction).
# ----------------------------------------------------------------------------
def _stats_kernel(x_ref, w_ref, psum_ref, psq_ref, sum_acc, sq_acc):
    s = pl.program_id(2)

    @pl.when(s == 0)
    def _():
        sum_acc[...] = jnp.zeros_like(sum_acc)
        sq_acc[...] = jnp.zeros_like(sq_acc)

    y = jnp.dot(w_ref[...], x_ref[...], preferred_element_type=jnp.float32)
    # NOTE: these cross-lane reductions could also be pushed onto the idle MXU
    # (y @ ones), but this kernel is HBM-bound so the XLU reduce is off the
    # critical path on all three generations.
    sum_acc[...] += jnp.sum(y, axis=1, keepdims=True)
    sq_acc[...] += jnp.sum(y * y, axis=1, keepdims=True)

    @pl.when(s == pl.num_programs(2) - 1)
    def _():
        psum_ref[...] = sum_acc[...]
        psq_ref[...] = sq_acc[...]


# ----------------------------------------------------------------------------
# Streaming fallback, pass 2: recompute the cheap conv, fused FMA + ReLU.
# ----------------------------------------------------------------------------
def _apply_kernel(x_ref, w_ref, scale_ref, shift_ref, o_ref):
    y = jnp.dot(w_ref[...], x_ref[...], preferred_element_type=jnp.float32)
    o_ref[...] = jnp.maximum(y * scale_ref[...] + shift_ref[...], 0.0).astype(o_ref.dtype)


def _pick_spatial_tile(S, max_tile):
    """Return (tile, padded_S): tile is a multiple of 128 (or == S), padded_S % tile == 0."""
    max_tile = max(128, (max_tile // 128) * 128)
    if S <= max_tile:
        return S, S                                   # one full-extent (lane-dense) block
    S128 = -(-S // 128) * 128
    best = 128
    for t in range(max_tile, 127, -128):              # largest multiple-of-128 divisor
        if S128 % t == 0:
            best = t
            break
    if best * 2 >= max_tile:
        return best, S128                             # exact (<=127-elem-pad) divisor
    # Only tiny exact divisors exist: pad further so tiles (and DMA rows) stay large.
    return max_tile, -(-S // max_tile) * max_tile


def conv1x1_instnorm_relu(x, conv_w, conv_b, gamma, beta, *, eps=1e-5,
                          vmem_budget_bytes=None):
    """Fused Conv3d(kernel_size=1) + InstanceNorm3d(affine, training-mode stats) + ReLU.

    x:      (N, Cin, D, H, W)   conv_w: (Cout, Cin, 1, 1, 1)
    conv_b: (Cout,)  -- unused: cancelled exactly by the norm's mean subtraction.
    gamma, beta: (Cout,).  Output dtype follows x (bf16 in -> bf16 out).
    """
    del conv_b
    N, Cin, D, H, W = x.shape
    Cout = conv_w.shape[0]
    S = D * H * W

    # Free reshapes only -- native channel-major layout, spatial on the lane axis.
    x3 = x.reshape(N, Cin, S)
    w2 = conv_w.reshape(Cout, Cin).astype(x.dtype)      # bf16 weights for bf16 x
    g2 = gamma.reshape(Cout, 1).astype(jnp.float32)
    b2 = beta.reshape(Cout, 1).astype(jnp.float32)

    eb = jnp.dtype(x.dtype).itemsize                    # activation / output bytes
    cap = _tpu_vmem_capacity_bytes()                    # generation-aware (v7x: 64 MiB)
    budget = int(vmem_budget_bytes) if vmem_budget_bytes is not None else (cap * 3) // 5
    # Raise the scoped-VMEM limit explicitly (v5e defaults to 16 MiB, v6e/v7x to 32 MiB).
    vmem_limit = min((cap * 3) // 4, 96 * 1024 * 1024)

    def _params(sem):
        return pltpu.CompilerParams(dimension_semantics=sem,
                                    vmem_limit_bytes=vmem_limit)

    # ------------------------- single-pass fast path -------------------------
    # Double-buffered x + out tiles, f32 y scratch, weights, per instance.
    fp_single = (2 * Cin * S * eb + 2 * Cout * S * eb + Cout * S * 4
                 + 2 * Cout * Cin * eb + 64 * Cout)
    if fp_single <= budget:
        out3 = pl.pallas_call(
            functools.partial(_fused_kernel, eps=eps, inv_s=1.0 / S),
            out_shape=jax.ShapeDtypeStruct((N, Cout, S), x.dtype),
            grid=(N,),
            in_specs=[pl.BlockSpec((None, Cin, S), lambda n: (n, 0, 0)),
                      pl.BlockSpec((Cout, Cin), lambda n: (0, 0)),
                      pl.BlockSpec((Cout, 1), lambda n: (0, 0)),
                      pl.BlockSpec((Cout, 1), lambda n: (0, 0))],
            out_specs=pl.BlockSpec((None, Cout, S), lambda n: (n, 0, 0)),
            scratch_shapes=[pltpu.VMEM((Cout, S), jnp.float32)],
            compiler_params=_params(("parallel",)),
        )(x3, w2, g2, b2)
        return out3.reshape(N, Cout, D, H, W)

    # -------------------- two-pass streaming fallback (large S) --------------------
    per_col = 2 * Cin * eb + 2 * Cout * eb + 4 * Cout   # bytes / spatial column / step
    ts, S_pad = _pick_spatial_tile(S, budget // per_col)
    if S_pad != S:
        # Exact: zero columns contribute 0 to sum and sumsq; stats divide by true S.
        x3 = jnp.pad(x3, ((0, 0), (0, 0), (0, S_pad - S)))
    num_s = S_pad // ts
    # Second "parallel" axis so a v7x megacore is not idle in pass 1 when N is 1/odd.
    NC = 2 if num_s % 2 == 0 else 1
    spc = num_s // NC

    psum, psq = pl.pallas_call(
        _stats_kernel,
        out_shape=(jax.ShapeDtypeStruct((N * NC, Cout, 1), jnp.float32),
                   jax.ShapeDtypeStruct((N * NC, Cout, 1), jnp.float32)),
        grid=(N, NC, spc),
        in_specs=[pl.BlockSpec((None, Cin, ts), lambda n, c, s: (n, 0, c * spc + s)),
                  pl.BlockSpec((Cout, Cin), lambda n, c, s: (0, 0))],
        out_specs=(pl.BlockSpec((None, Cout, 1), lambda n, c, s: (n * NC + c, 0, 0)),
                   pl.BlockSpec((None, Cout, 1), lambda n, c, s: (n * NC + c, 0, 0))),
        scratch_shapes=[pltpu.VMEM((Cout, 1), jnp.float32),
                        pltpu.VMEM((Cout, 1), jnp.float32)],
        compiler_params=_params(("parallel", "parallel", "arbitrary")),
    )(x3, w2)

    # Tiny per-(n, channel) finalize in plain JAX (N*Cout elements).
    # TODO(synk): E[y^2]-mean^2 in f32 is cancellation-prone when |mean| >> std;
    # the single-pass path (the default) avoids it via centered variance.
    mean = psum.reshape(N, NC, Cout, 1).sum(axis=1) / float(S)
    ex2 = psq.reshape(N, NC, Cout, 1).sum(axis=1) / float(S)
    var = jnp.maximum(ex2 - mean * mean, 0.0)
    scale = g2[None] * jax.lax.rsqrt(var + eps)          # (N, Cout, 1)
    shift = b2[None] - mean * scale

    out3 = pl.pallas_call(
        _apply_kernel,
        out_shape=jax.ShapeDtypeStruct((N, Cout, S_pad), x.dtype),
        grid=(N, num_s),
        in_specs=[pl.BlockSpec((None, Cin, ts), lambda n, s: (n, 0, s)),
                  pl.BlockSpec((Cout, Cin), lambda n, s: (0, 0)),
                  pl.BlockSpec((None, Cout, 1), lambda n, s: (n, 0, 0)),
                  pl.BlockSpec((None, Cout, 1), lambda n, s: (n, 0, 0))],
        out_specs=pl.BlockSpec((None, Cout, ts), lambda n, s: (n, 0, s)),
        compiler_params=_params(("parallel", "parallel")),
    )(x3, w2, scale, shift)

    if S_pad != S:
        out3 = out3[:, :, :S]
    return out3.reshape(N, Cout, D, H, W)


def _reference(x, conv_w, conv_b, gamma, beta, eps=1e-5):
    """Pure-JAX mirror of Conv3d(k=1, bias) + InstanceNorm3d(affine, train) + ReLU."""
    Cout, Cin = conv_w.shape[0], conv_w.shape[1]
    w = conv_w.reshape(Cout, Cin)
    y = jnp.einsum("ncdhw,oc->nodhw", x, w, precision="highest")
    y = y + conv_b[None, :, None, None, None]
    mean = jnp.mean(y, axis=(2, 3, 4), keepdims=True)
    var = jnp.mean((y - mean) ** 2, axis=(2, 3, 4), keepdims=True)
    y_hat = (y - mean) / jnp.sqrt(var + eps)
    y_hat = y_hat * gamma[None, :, None, None, None] + beta[None, :, None, None, None]
    return jnp.maximum(y_hat, 0.0)


if __name__ == "__main__":
    key = jax.random.PRNGKey(0)
    k_x, k_w, k_b, k_g, k_be = jax.random.split(key, 5)

    # Small shapes consistent with a MaskHead stage (Conv3d(64->64, k=1) +
    # InstanceNorm3d(64) + ReLU) applied to a cropped ROI.
    N, Cin, Cout, D, H, W = 2, 64, 64, 8, 8, 16
    x = jax.random.normal(k_x, (N, Cin, D, H, W), dtype=jnp.float32)

    conv_w = jax.random.normal(k_w, (Cout, Cin, 1, 1, 1), dtype=jnp.float32) * 0.1
    conv_b = jax.random.normal(k_b, (Cout,), dtype=jnp.float32) * 0.1
    gamma = 1.0 + 0.1 * jax.random.normal(k_g, (Cout,), dtype=jnp.float32)
    beta = 0.1 * jax.random.normal(k_be, (Cout,), dtype=jnp.float32)

    ref = _reference(x, conv_w, conv_b, gamma, beta)

    # 1) Default: single-pass resident fast path (fits the VMEM budget easily).
    out_fast = jax.block_until_ready(
        conv1x1_instnorm_relu(x, conv_w, conv_b, gamma, beta))
    assert out_fast.shape == (N, Cout, D, H, W)
    err = float(jnp.max(jnp.abs(out_fast - ref)))
    assert jnp.allclose(out_fast, ref, atol=1e-3, rtol=1e-3), err

    # 2) Tiny budget override: forces the two-pass streaming fallback
    #    (tiled S, chunk-parallel stats) so that path is exercised too.
    out_stream = jax.block_until_ready(
        conv1x1_instnorm_relu(x, conv_w, conv_b, gamma, beta,
                              vmem_budget_bytes=512 * 1024))
    err = float(jnp.max(jnp.abs(out_stream - ref)))
    assert jnp.allclose(out_stream, ref, atol=1e-3, rtol=1e-3), err

    # 3) bf16 activations (memory-bound kernel => ~2x less HBM traffic).
    x_bf = x.astype(jnp.bfloat16)
    out_bf = jax.block_until_ready(
        conv1x1_instnorm_relu(x_bf, conv_w, conv_b, gamma, beta))
    assert out_bf.dtype == jnp.bfloat16
    ref_bf = _reference(x_bf.astype(jnp.float32),
                        conv_w.astype(jnp.bfloat16).astype(jnp.float32),
                        conv_b, gamma, beta)
    err = float(jnp.max(jnp.abs(out_bf.astype(jnp.float32) - ref_bf)))
    assert jnp.allclose(out_bf.astype(jnp.float32), ref_bf, atol=5e-2, rtol=5e-2), err

    print("KERNEL_OK")
</pallas_src>

<mosaic_0001>
module attributes {stable_mosaic.version = 11 : i64} {
  func.func @_fused_kernel(%arg0: i32, %arg1: memref<1x64x1024xf32, #tpu.memory_space<vmem>>, %arg2: memref<64x64xf32, #tpu.memory_space<vmem>>, %arg3: memref<64x1xf32, #tpu.memory_space<vmem>>, %arg4: memref<64x1xf32, #tpu.memory_space<vmem>>, %arg5: memref<1x64x1024xf32, #tpu.memory_space<vmem>>, %arg6: memref<64x1024xf32, #tpu.memory_space<vmem>>) attributes {dimension_semantics = [#tpu.dimension_semantics<parallel>], iteration_bounds = array<i64: 2>, scalar_prefetch = 0 : i64, scratch_operands = 1 : i64, tpu.core_type = #tpu.core_type<tc>, window_params = [{transform_indices = @transform_0, window_bounds = array<i64: 1, 64, 1024>}, {pipeline_mode = #tpu.pipeline_mode<synchronous>, transform_indices = @transform_1, window_bounds = array<i64: 64, 64>}, {pipeline_mode = #tpu.pipeline_mode<synchronous>, transform_indices = @transform_2, window_bounds = array<i64: 64, 1>}, {pipeline_mode = #tpu.pipeline_mode<synchronous>, transform_indices = @transform_3, window_bounds = array<i64: 64, 1>}, {transform_indices = @transform_4, window_bounds = array<i64: 1, 64, 1024>}]} {
    %c0 = arith.constant 0 : index
    %c0_0 = arith.constant 0 : index
    %0 = vector.load %arg2[%c0, %c0_0] : memref<64x64xf32, #tpu.memory_space<vmem>>, vector<64x64xf32>
    %c0_1 = arith.constant 0 : index
    %c0_2 = arith.constant 0 : index
    %c0_3 = arith.constant 0 : index
    %1 = vector.load %arg1[%c0_1, %c0_2, %c0_3] : memref<1x64x1024xf32, #tpu.memory_space<vmem>>, vector<1x64x1024xf32>
    %2 = vector.shape_cast %1 : vector<1x64x1024xf32> to vector<64x1024xf32>
    %cst = arith.constant dense<0.000000e+00> : vector<64x1024xf32>
    %3 = tpu.matmul %0, %2, %cst {dimension_numbers = #tpu.dot_dimension_numbers<[1], [0], [0], [1], [0, 0, 1, 1], [], []>} : vector<64x64xf32>, vector<64x1024xf32>, vector<64x1024xf32> -> vector<64x1024xf32>
    %c0_4 = arith.constant 0 : index
    %c0_5 = arith.constant 0 : index
    %4 = vector.load %arg6[%c0_4, %c0_5] : memref<64x1024xf32, #tpu.memory_space<vmem>>, vector<64x1024xf32>
    tpu.vector_store %arg6[%c0_4, %c0_5], %3 {strides = array<i32>} : memref<64x1024xf32, #tpu.memory_space<vmem>>, vector<64x1024xf32>,
    %c0_6 = arith.constant 0 : index
    %c0_7 = arith.constant 0 : index
    %5 = vector.load %arg6[%c0_6, %c0_7] : memref<64x1024xf32, #tpu.memory_space<vmem>>, vector<64x1024xf32>
    %cst_8 = arith.constant dense<0.000000e+00> : vector<64xf32>
    %6 = vector.multi_reduction <add>, %5, %cst_8 [1] : vector<64x1024xf32> to vector<64xf32>
    %7 = vector.shape_cast %6 : vector<64xf32> to vector<64x1xf32>
    %cst_9 = arith.constant 9.765625E-4 : f32
    %8 = vector.broadcast %cst_9 : f32 to vector<64x1xf32>
    %9 = arith.mulf %7, %8 : vector<64x1xf32>
    %c0_10 = arith.constant 0 : index
    %c0_11 = arith.constant 0 : index
    %10 = vector.load %arg6[%c0_10, %c0_11] : memref<64x1024xf32, #tpu.memory_space<vmem>>, vector<64x1024xf32>
    %11 = vector.broadcast %9 : vector<64x1xf32> to vector<64x1024xf32>
    %12 = arith.subf %10, %11 : vector<64x1024xf32>
    %c0_12 = arith.constant 0 : index
    %c0_13 = arith.constant 0 : index
    %13 = vector.load %arg6[%c0_12, %c0_13] : memref<64x1024xf32, #tpu.memory_space<vmem>>, vector<64x1024xf32>
    tpu.vector_store %arg6[%c0_12, %c0_13], %12 {strides = array<i32>} : memref<64x1024xf32, #tpu.memory_space<vmem>>, vector<64x1024xf32>,
    %c0_14 = arith.constant 0 : index
    %c0_15 = arith.constant 0 : index
    %14 = vector.load %arg6[%c0_14, %c0_15] : memref<64x1024xf32, #tpu.memory_space<vmem>>, vector<64x1024xf32>
    %c0_16 = arith.constant 0 : index
    %c0_17 = arith.constant 0 : index
    %15 = vector.load %arg6[%c0_16, %c0_17] : memref<64x1024xf32, #tpu.memory_space<vmem>>, vector<64x1024xf32>
    %16 = arith.mulf %14, %15 : vector<64x1024xf32>
    %cst_18 = arith.constant dense<0.000000e+00> : vector<64xf32>
    %17 = vector.multi_reduction <add>, %16, %cst_18 [1] : vector<64x1024xf32> to vector<64xf32>
    %18 = vector.shape_cast %17 : vector<64xf32> to vector<64x1xf32>
    %cst_19 = arith.constant 9.765625E-4 : f32
    %19 = vector.broadcast %cst_19 : f32 to vector<64x1xf32>
    %20 = arith.mulf %18, %19 : vector<64x1xf32>
    %c0_20 = arith.constant 0 : index
    %c0_21 = arith.constant 0 : index
    %21 = vector.load %arg3[%c0_20, %c0_21] : memref<64x1xf32, #tpu.memory_space<vmem>>, vector<64x1xf32>
    %cst_22 = arith.constant 9.99999974E-6 : f32
    %22 = vector.broadcast %cst_22 : f32 to vector<64x1xf32>
    %23 = arith.addf %20, %22 : vector<64x1xf32>
    %24 = math.rsqrt %23 : vector<64x1xf32>
    %25 = arith.mulf %21, %24 : vector<64x1xf32>
    %c0_23 = arith.constant 0 : index
    %c0_24 = arith.constant 0 : index
    %26 = vector.load %arg6[%c0_23, %c0_24] : memref<64x1024xf32, #tpu.memory_space<vmem>>, vector<64x1024xf32>
    %27 = vector.broadcast %25 : vector<64x1xf32> to vector<64x1024xf32>
    %28 = arith.mulf %26, %27 : vector<64x1024xf32>
    %c0_25 = arith.constant 0 : index
    %c0_26 = arith.constant 0 : index
    %29 = vector.load %arg4[%c0_25, %c0_26] : memref<64x1xf32, #tpu.memory_space<vmem>>, vector<64x1xf32>
    %30 = vector.broadcast %29 : vector<64x1xf32> to vector<64x1024xf32>
    %31 = arith.addf %28, %30 : vector<64x1024xf32>
    %cst_27 = arith.constant 0.000000e+00 : f32
    %32 = vector.broadcast %cst_27 : f32 to vector<64x1024xf32>
    %33 = arith.maximumf %31, %32 : vector<64x1024xf32>
    %c0_28 = arith.constant 0 : index
    %c0_29 = arith.constant 0 : index
    %c0_30 = arith.constant 0 : index
    %34 = vector.load %arg5[%c0_28, %c0_29, %c0_30] : memref<1x64x1024xf32, #tpu.memory_space<vmem>>, vector<1x64x1024xf32>
    %35 = vector.shape_cast %34 : vector<1x64x1024xf32> to vector<64x1024xf32>
    %36 = vector.shape_cast %33 : vector<64x1024xf32> to vector<1x64x1024xf32>
    tpu.vector_store %arg5[%c0_28, %c0_29, %c0_30], %36 {strides = array<i32>} : memref<1x64x1024xf32, #tpu.memory_space<vmem>>, vector<1x64x1024xf32>,
    return
  }
  func.func @transform_0(%arg0: i32) -> (i32, i32, i32) {
    %c0_i32 = arith.constant 0 : i32
    %c0_i32_0 = arith.constant 0 : i32
    %c0_i32_1 = arith.constant 0 : i32
    return %arg0, %c0_i32, %c0_i32_0 : i32, i32, i32
  }
  func.func @transform_1(%arg0: i32) -> (i32, i32) {
    %c0_i32 = arith.constant 0 : i32
    %c0_i32_0 = arith.constant 0 : i32
    %c0_i32_1 = arith.constant 0 : i32
    return %c0_i32, %c0_i32_0 : i32, i32
  }
  func.func @transform_2(%arg0: i32) -> (i32, i32) {
    %c0_i32 = arith.constant 0 : i32
    %c0_i32_0 = arith.constant 0 : i32
    %c0_i32_1 = arith.constant 0 : i32
    return %c0_i32, %c0_i32_0 : i32, i32
  }
  func.func @transform_3(%arg0: i32) -> (i32, i32) {
    %c0_i32 = arith.constant 0 : i32
    %c0_i32_0 = arith.constant 0 : i32
    %c0_i32_1 = arith.constant 0 : i32
    return %c0_i32, %c0_i32_0 : i32, i32
  }
  func.func @transform_4(%arg0: i32) -> (i32, i32, i32) {
    %c0_i32 = arith.constant 0 : i32
    %c0_i32_0 = arith.constant 0 : i32
    %c0_i32_1 = arith.constant 0 : i32
    return %arg0, %c0_i32, %c0_i32_0 : i32, i32, i32
  }
}

</mosaic_0001>

<llo_original>
// kernel: tpu_custom_call.1
$region0: #{tpu_custom_call.1}
  #allocation0 [shape = 'u32[]', space=smem, size = 0x4, offset = 0x4, fixed_abs, tag = 'smem constant byte address 0x4 - core index']
  #allocation1 [shape = 'u32[144,128]{1,0:T(1,128)}', space=vmem, size = 0x12000, scoped, tag = 'internal scratch']
  #allocation2 [shape = 'f32[64,1024]{1,0:T(8,128)}', space=vmem, size = 0x40000, scoped, tag = 'scratch operand']
  %s0 = inlined_call_operand.hbm [shape: f32[2,64,1024], index: 0, kind: input, shape index: {}]
  %s1 = inlined_call_operand.vmem [shape: f32[64,64], index: 1, kind: input, shape index: {}]
  %s2 = inlined_call_operand.vmem [shape: f32[64,1], index: 2, kind: input, shape index: {}]
  %s3 = inlined_call_operand.vmem [shape: f32[64,1], index: 3, kind: input, shape index: {}]
  %s4 = inlined_call_operand.hbm [shape: f32[2,64,1024], index: 4, kind: output, shape index: {}]
  %s5 = sld [smem:[#allocation0]]
  $region53: #{tpu_custom_call.1} parent=0
    _
  %s7 = ssub.s32 1, %s5
  %s8 = scalar_select 0, %s7, %s5
  $region1: #{tpu_custom_call.1} parent=0
    #allocation3 [shape = 'u8[524288]{0}', space=vmem, size = 0x80000, scoped, tag = 'input window, operand 0']
    #allocation4 [shape = 's32[2]{0}', space=sflag, size = 0x8, scoped, tag = 'scoped memory for tpu_custom_call.1']
    #allocation5 [shape = 's32[2]{0}', space=sflag, size = 0x8, scoped, tag = 'scoped memory for tpu_custom_call.1']
    #allocation6 [shape = 'u8[524288]{0}', space=vmem, size = 0x80000, scoped, tag = 'output window, operand 0']
    %9 = vsyncpa [#allocation4], 0
    %s10 = scalar_lea.sflag [#allocation4], 1
    %11 = vsyncpa %s10, 0
    %12 = vsyncpa [#allocation5], 0
    %s13 = scalar_lea.sflag [#allocation5], 1
    %14 = vsyncpa %s13, 0
    loop: start=0, step=1, limit=4
    $region2: #{tpu_custom_call.1} parent=1 // loop_pre_header
      _
    $region3: #{tpu_custom_call.1} parent=1 // loop_header
      %s16 = sphi 0, %s20
      %p17 = scmp.ge.s32.totalorder %s16, 4
      %s26 = sphi 0, %s28
      %s29 = sphi 0, %s26
      %s30 = sphi 0, %s29
      %s46 = sphi 0, %s30
      %s50 = sphi 0, %s50
      %s52 = sphi 0, %s50
      %s53 = sphi 0, %s52
      %s67 = sphi 0, %s53
      %s71 = sphi 0, %s71
      %s73 = sphi 0, %s71
      %s74 = sphi 0, %s73
      %s88 = sphi 0, %s74
      %s92 = sphi 0, %s92
      %s94 = sphi 0, %s92
      %s95 = sphi 0, %s94
      %s109 = sphi 0, %s95
      %s115 = sphi 0, %s117
      %s118 = sphi 0, %s115
      %s119 = sphi 0, %s118
      %s135 = sphi 0, %s119
    $region4: #{tpu_custom_call.1} parent=1 // loop_header_branch
      %19 = sbr.rel (%p17) target = $region8
    $region5: #{tpu_custom_call.1} parent=1 // loop_body
      %s21 = ssub.s32 %s16, 1
      %s22 = ssub.s32 %s16, 2
      %s23 = sadd.s32 %s16, 1
      %s24 = ssub.s32 %s16, %s23
      %p25 = scmp.eq.s32.totalorder %s24, 0
      %s27 = sadd.s32 %s26, 1
      %s28 = scalar_select %p25, %s26, %s27
      %p31 = pneg %p25
      %p32 = scmp.eq.s32.totalorder %s16, 1
      %p33 = por %p31, %p32
      %p34 = scmp.ne.s32.totalorder %s26, %s29
      %p35 = scmp.eq.s32.totalorder %s16, 0
      %p36 = por %p34, %p35
      %p37 = scmp.ne.s32.totalorder %s26, %s29
      %p38 = scmp.eq.s32.totalorder %s21, 1
      %p39 = por %p37, %p38
      %p40 = scmp.ne.s32.totalorder %s29, %s30
      %p41 = scmp.eq.s32.totalorder %s21, 0
      %p42 = por %p40, %p41
      %p43 = scmp.ne.s32.totalorder %s29, %s30
      %p44 = scmp.eq.s32.totalorder %s22, 1
      %p45 = por %p43, %p44
      %p47 = scmp.ne.s32.totalorder %s30, %s46
      %p48 = scmp.eq.s32.totalorder %s22, 0
      %p49 = por %p47, %p48
      %s51 = sadd.s32 %s50, 1
      %p54 = scmp.eq.s32.totalorder %s16, 1
      %p55 = scmp.ne.s32.totalorder %s50, %s52
      %p56 = scmp.eq.s32.totalorder %s16, 0
      %p57 = por %p55, %p56
      %p58 = scmp.ne.s32.totalorder %s50, %s52
      %p59 = scmp.eq.s32.totalorder %s21, 1
      %p60 = por %p58, %p59
      %p61 = scmp.ne.s32.totalorder %s52, %s53
      %p62 = scmp.eq.s32.totalorder %s21, 0
      %p63 = por %p61, %p62
      %p64 = scmp.ne.s32.totalorder %s52, %s53
      %p65 = scmp.eq.s32.totalorder %s22, 1
      %p66 = por %p64, %p65
      %p68 = scmp.ne.s32.totalorder %s53, %s67
      %p69 = scmp.eq.s32.totalorder %s22, 0
      %p70 = por %p68, %p69
      %s72 = sadd.s32 %s71, 1
      %p75 = scmp.eq.s32.totalorder %s16, 1
      %p76 = scmp.ne.s32.totalorder %s71, %s73
      %p77 = scmp.eq.s32.totalorder %s16, 0
      %p78 = por %p76, %p77
      %p79 = scmp.ne.s32.totalorder %s71, %s73
      %p80 = scmp.eq.s32.totalorder %s21, 1
      %p81 = por %p79, %p80
      %p82 = scmp.ne.s32.totalorder %s73, %s74
      %p83 = scmp.eq.s32.totalorder %s21, 0
      %p84 = por %p82, %p83
      %p85 = scmp.ne.s32.totalorder %s73, %s74
      %p86 = scmp.eq.s32.totalorder %s22, 1
      %p87 = por %p85, %p86
      %p89 = scmp.ne.s32.totalorder %s74, %s88
      %p90 = scmp.eq.s32.totalorder %s22, 0
      %p91 = por %p89, %p90
      %s93 = sadd.s32 %s92, 1
      %p96 = scmp.eq.s32.totalorder %s16, 1
      %p97 = scmp.ne.s32.totalorder %s92, %s94
      %p98 = scmp.eq.s32.totalorder %s16, 0
      %p99 = por %p97, %p98
      %p100 = scmp.ne.s32.totalorder %s92, %s94
      %p101 = scmp.eq.s32.totalorder %s21, 1
      %p102 = por %p100, %p101
      %p103 = scmp.ne.s32.totalorder %s94, %s95
      %p104 = scmp.eq.s32.totalorder %s21, 0
      %p105 = por %p103, %p104
      %p106 = scmp.ne.s32.totalorder %s94, %s95
      %p107 = scmp.eq.s32.totalorder %s22, 1
      %p108 = por %p106, %p107
      %p110 = scmp.ne.s32.totalorder %s95, %s109
      %p111 = scmp.eq.s32.totalorder %s22, 0
      %p112 = por %p110, %p111
      %s113 = ssub.s32 %s16, %s23
      %p114 = scmp.eq.s32.totalorder %s113, 0
      %s116 = sadd.s32 %s115, 1
      %s117 = scalar_select %p114, %s115, %s116
      %p120 = pneg %p114
      %p121 = scmp.eq.s32.totalorder %s16, 1
      %p122 = por %p120, %p121
      %p123 = scmp.ne.s32.totalorder %s115, %s118
      %p124 = scmp.eq.s32.totalorder %s16, 0
      %p125 = por %p123, %p124
      %p126 = scmp.ne.s32.totalorder %s115, %s118
      %p127 = scmp.eq.s32.totalorder %s21, 1
      %p128 = por %p126, %p127
      %p129 = scmp.ne.s32.totalorder %s118, %s119
      %p130 = scmp.eq.s32.totalorder %s21, 0
      %p131 = por %p129, %p130
      %p132 = scmp.ne.s32.totalorder %s118, %s119
      %p133 = scmp.eq.s32.totalorder %s22, 1
      %p134 = por %p132, %p133
      %p136 = scmp.ne.s32.totalorder %s119, %s135
      %p137 = scmp.eq.s32.totalorder %s22, 0
      %p138 = por %p136, %p137
      %p139 = scmp.le.s32.totalorder 1, %s16
      %p140 = scmp.lt.s32.totalorder %s16, 3
      %p141 = pnand %p139, %p140
      %p142 = pneg %p141
      // Predicated region
      $region9: #{tpu_custom_call.1} parent=5 // pred_check
        _
      $region10: #{tpu_custom_call.1} parent=5 // pred_check_branch
        %144 = sbr.rel (%p141) target = $region12
      $region11: #{tpu_custom_call.1} parent=5 // pred_region
        %s145 = ssub.s32 %s16, 1
        // Predicated region
        $region13: #{tpu_custom_call.1} parent=11 // pred_check
          %p146 = pneg %p63
        $region14: #{tpu_custom_call.1} parent=11 // pred_check_branch
          %148 = sbr.rel (%p146) target = $region16
        $region15: #{tpu_custom_call.1} parent=11 // pred_region
          _
        $region16: #{tpu_custom_call.1} parent=11 // pred_fallthru
          _
        // Predicated region
        $region17: #{tpu_custom_call.1} parent=11 // pred_check
          %p149 = pneg %p84
        $region18: #{tpu_custom_call.1} parent=11 // pred_check_branch
          %151 = sbr.rel (%p149) target = $region20
        $region19: #{tpu_custom_call.1} parent=11 // pred_region
          _
        $region20: #{tpu_custom_call.1} parent=11 // pred_fallthru
          _
        // Predicated region
        $region21: #{tpu_custom_call.1} parent=11 // pred_check
          %p152 = pneg %p105
        $region22: #{tpu_custom_call.1} parent=11 // pred_check_branch
          %154 = sbr.rel (%p152) target = $region24
        $region23: #{tpu_custom_call.1} parent=11 // pred_region
          _
        $region24: #{tpu_custom_call.1} parent=11 // pred_fallthru
          _
      $region12: #{tpu_custom_call.1} parent=5 // pred_fallthru
        _
      %p155 = scmp.lt.s32.totalorder %s16, 2
      // Predicated region
      $region25: #{tpu_custom_call.1} parent=5 // pred_check
        %p156 = pneg %p155
      $region26: #{tpu_custom_call.1} parent=5 // pred_check_branch
        %158 = sbr.rel (%p156) target = $region28
      $region27: #{tpu_custom_call.1} parent=5 // pred_region
        // Predicated region
        $region29: #{tpu_custom_call.1} parent=27 // pred_check
          %p159 = pneg %p36
        $region30: #{tpu_custom_call.1} parent=27 // pred_check_branch
          %161 = sbr.rel (%p159) target = $region32
        $region31: #{tpu_custom_call.1} parent=27 // pred_region
          %s162 = sand.u32 %s26, 1
          %s163 = scalar_lea.sflag [#allocation4], %s162
          %s164 = sand.u32 %s26, 1
          %s165 = smul.addr %s164, 512
          %s166 = scalar_lea.vmem [#allocation3], %s165
          %s168 = ssub.s32 8192, 8192
          %169 = vsyncadd %s163, %s168
          %s170 = smul.addr %s16, 64
          %s171 = smul.addr %s170, 128
          %s172 = scalar_lea.hbm %s0, %s171
          %s173 = sshll.u32 %s166, 4
          %s174 = int_to_ptr.vmem [resolvable:$true] %s173
          %179 = dma.hbm_to_vmem [thread:$0]  %s172, 8192, %s174, %s163, 1024, 1024, 64
        $region32: #{tpu_custom_call.1} parent=27 // pred_fallthru
          _
      $region28: #{tpu_custom_call.1} parent=5 // pred_fallthru
        _
      %p180 = scmp.le.s32.totalorder 1, %s16
      %p181 = scmp.lt.s32.totalorder %s16, 3
      %p182 = pnand %p180, %p181
      %p183 = pneg %p182
      // Predicated region
      $region33: #{tpu_custom_call.1} parent=5 // pred_check
        _
      $region34: #{tpu_custom_call.1} parent=5 // pred_check_branch
        %185 = sbr.rel (%p182) target = $region36
      $region35: #{tpu_custom_call.1} parent=5 // pred_region
        %s186 = ssub.s32 %s16, 1
        %s187 = sand.u32 %s29, 1
        %s188 = scalar_lea.sflag [#allocation4], %s187
        %s189 = sand.u32 %s29, 1
        %s190 = smul.addr %s189, 512
        %s191 = scalar_lea.vmem [#allocation3], %s190
        // Predicated region
        $region37: #{tpu_custom_call.1} parent=35 // pred_check
          %p192 = pneg %p42
        $region38: #{tpu_custom_call.1} parent=35 // pred_check_branch
          %194 = sbr.rel (%p192) target = $region40
        $region39: #{tpu_custom_call.1} parent=35 // pred_region
          %195 = dma.done %s188, 8192
        $region40: #{tpu_custom_call.1} parent=35 // pred_fallthru
          _
        %s196 = sand.u32 %s29, 1
        %s197 = scalar_lea.sflag [#allocation4], %s196
        %s198 = sand.u32 %s29, 1
        %s199 = smul.addr %s198, 512
        %s200 = scalar_lea.vmem [#allocation3], %s199
        %p201 = pneg %p42
        %p202 = pneg %p39
        %p203 = pneg %p63
        %p204 = pneg %p60
        %p205 = pneg %p84
        %p206 = pneg %p81
        %p207 = pneg %p105
        %p208 = pneg %p102
        %p209 = pneg %p131
        %p210 = pneg %p128
        %s211 = sand.u32 %s118, 1
        %s212 = scalar_lea.sflag [#allocation5], %s211
        %s213 = sand.u32 %s118, 1
        %s214 = smul.addr %s213, 512
        %s215 = scalar_lea.vmem [#allocation6], %s214
        %v216 = vld [vmem:[%s1] sm:$0xff]
        %v217 = vld [vmem:[%s1 + $0x8] sm:$0xff]
        %v218 = vld [vmem:[%s1 + $0x10] sm:$0xff]
        %v219 = vld [vmem:[%s1 + $0x18] sm:$0xff]
        %v220 = vld [vmem:[%s1 + $0x20] sm:$0xff]
        %v221 = vld [vmem:[%s1 + $0x28] sm:$0xff]
        %v222 = vld [vmem:[%s1 + $0x30] sm:$0xff]
        %v223 = vld [vmem:[%s1 + $0x38] sm:$0xff]
        %v224 = vld [vmem:[%s191] sm:$0xff]
        %v225 = vld [vmem:[%s191 + $0x8] sm:$0xff]
        %v226 = vld [vmem:[%s191 + $0x10] sm:$0xff]
        %v227 = vld [vmem:[%s191 + $0x18] sm:$0xff]
        %v228 = vld [vmem:[%s191 + $0x20] sm:$0xff]
        %v229 = vld [vmem:[%s191 + $0x28] sm:$0xff]
        %v230 = vld [vmem:[%s191 + $0x30] sm:$0xff]
        %v231 = vld [vmem:[%s191 + $0x38] sm:$0xff]
        %v232 = vld [vmem:[%s191 + $0x40] sm:$0xff]
        %v233 = vld [vmem:[%s191 + $0x48] sm:$0xff]
        %v234 = vld [vmem:[%s191 + $0x50] sm:$0xff]
        %v235 = vld [vmem:[%s191 + $0x58] sm:$0xff]
        %v236 = vld [vmem:[%s191 + $0x60] sm:$0xff]
        %v237 = vld [vmem:[%s191 + $0x68] sm:$0xff]
        %v238 = vld [vmem:[%s191 + $0x70] sm:$0xff]
        %v239 = vld [vmem:[%s191 + $0x78] sm:$0xff]
        %v240 = vld [vmem:[%s191 + $0x80] sm:$0xff]
        %v241 = vld [vmem:[%s191 + $0x88] sm:$0xff]
        %v242 = vld [vmem:[%s191 + $0x90] sm:$0xff]
        %v243 = vld [vmem:[%s191 + $0x98] sm:$0xff]
        %v244 = vld [vmem:[%s191 + $0xa0] sm:$0xff]
        %v245 = vld [vmem:[%s191 + $0xa8] sm:$0xff]
        %v246 = vld [vmem:[%s191 + $0xb0] sm:$0xff]
        %v247 = vld [vmem:[%s191 + $0xb8] sm:$0xff]
        %v248 = vld [vmem:[%s191 + $0xc0] sm:$0xff]
        %v249 = vld [vmem:[%s191 + $0xc8] sm:$0xff]
        %v250 = vld [vmem:[%s191 + $0xd0] sm:$0xff]
        %v251 = vld [vmem:[%s191 + $0xd8] sm:$0xff]
        %v252 = vld [vmem:[%s191 + $0xe0] sm:$0xff]
        %v253 = vld [vmem:[%s191 + $0xe8] sm:$0xff]
        %v254 = vld [vmem:[%s191 + $0xf0] sm:$0xff]
        %v255 = vld [vmem:[%s191 + $0xf8] sm:$0xff]
        %v256 = vld [vmem:[%s191 + $0x100] sm:$0xff]
        %v257 = vld [vmem:[%s191 + $0x108] sm:$0xff]
        %v258 = vld [vmem:[%s191 + $0x110] sm:$0xff]
        %v259 = vld [vmem:[%s191 + $0x118] sm:$0xff]
        %v260 = vld [vmem:[%s191 + $0x120] sm:$0xff]
        %v261 = vld [vmem:[%s191 + $0x128] sm:$0xff]
        %v262 = vld [vmem:[%s191 + $0x130] sm:$0xff]
        %v263 = vld [vmem:[%s191 + $0x138] sm:$0xff]
        %v264 = vld [vmem:[%s191 + $0x140] sm:$0xff]
        %v265 = vld [vmem:[%s191 + $0x148] sm:$0xff]
        %v266 = vld [vmem:[%s191 + $0x150] sm:$0xff]
        %v267 = vld [vmem:[%s191 + $0x158] sm:$0xff]
        %v268 = vld [vmem:[%s191 + $0x160] sm:$0xff]
        %v269 = vld [vmem:[%s191 + $0x168] sm:$0xff]
        %v270 = vld [vmem:[%s191 + $0x170] sm:$0xff]
        %v271 = vld [vmem:[%s191 + $0x178] sm:$0xff]
        %v272 = vld [vmem:[%s191 + $0x180] sm:$0xff]
        %v273 = vld [vmem:[%s191 + $0x188] sm:$0xff]
        %v274 = vld [vmem:[%s191 + $0x190] sm:$0xff]
        %v275 = vld [vmem:[%s191 + $0x198] sm:$0xff]
        %v276 = vld [vmem:[%s191 + $0x1a0] sm:$0xff]
        %v277 = vld [vmem:[%s191 + $0x1a8] sm:$0xff]
        %v278 = vld [vmem:[%s191 + $0x1b0] sm:$0xff]
        %v279 = vld [vmem:[%s191 + $0x1b8] sm:$0xff]
        %v280 = vld [vmem:[%s191 + $0x1c0] sm:$0xff]
        %v281 = vld [vmem:[%s191 + $0x1c8] sm:$0xff]
        %v282 = vld [vmem:[%s191 + $0x1d0] sm:$0xff]
        %v283 = vld [vmem:[%s191 + $0x1d8] sm:$0xff]
        %v284 = vld [vmem:[%s191 + $0x1e0] sm:$0xff]
        %v285 = vld [vmem:[%s191 + $0x1e8] sm:$0xff]
        %v286 = vld [vmem:[%s191 + $0x1f0] sm:$0xff]
        %v287 = vld [vmem:[%s191 + $0x1f8] sm:$0xff]
        %vm288 = vcmask 523264
        %v290 = vsel %vm288, %v216, 0
        %v293 = vsel %vm288, %v217, 0
        %v296 = vsel %vm288, %v218, 0
        %v299 = vsel %vm288, %v219, 0
        %v302 = vsel %vm288, %v220, 0
        %v305 = vsel %vm288, %v221, 0
        %v308 = vsel %vm288, %v222, 0
        %v311 = vsel %vm288, %v223, 0
        %313 = vmatprep.subr.mxu0 0.0
        %314 = vmatpush1.msra.mxu0 0.0
        %315 = vmatprep.subr.mxu0 0.0
        %316 = vmatpush1.msra.mxu0 0.0
        %317 = vmatprep.subr.mxu0 0.0
        %318 = vmatpush1.msra.mxu0 0.0
        %319 = vmatprep.subr.mxu0 0.0
        %320 = vmatpush1.msra.mxu0 0.0
        %321 = vmatprep.subr.mxu0 0.0
        %322 = vmatpush1.msra.mxu0 0.0
        %323 = vmatprep.subr.mxu0 0.0
        %324 = vmatpush1.msra.mxu0 0.0
        %325 = vmatprep.subr.mxu0 0.0
        %326 = vmatpush1.msra.mxu0 0.0
        %327 = vmatprep.subr.mxu0 0.0
        %328 = vmatpush1.msra.mxu0 0.0
        %329 = vmatprep.subr.mxu0 %v281
        %330 = vmatpush1.msra.mxu0 %v280
        %331 = vmatprep.subr.mxu0 %v273
        %332 = vmatpush1.msra.mxu0 %v272
        %333 = vmatprep.subr.mxu0 %v265
        %334 = vmatpush1.msra.mxu0 %v264
        %335 = vmatprep.subr.mxu0 %v257
        %336 = vmatpush1.msra.mxu0 %v256
        %337 = vmatprep.subr.mxu0 %v249
        %338 = vmatpush1.msra.mxu0 %v248
        %339 = vmatprep.subr.mxu0 %v241
        %340 = vmatpush1.msra.mxu0 %v240
        %341 = vmatprep.subr.mxu0 %v233
        %342 = vmatpush1.msra.mxu0 %v232
        %343 = vmatprep.subr.mxu0 %v225
        %344 = vmatpush1.msra.mxu0 %v224
        %345 = vmatprep.subr.mxu0 0.0
        %346 = vmatpush2.msra.mxu0 0.0
        %347 = vmatprep.subr.mxu0 0.0
        %348 = vmatpush2.msra.mxu0 0.0
        %349 = vmatprep.subr.mxu0 0.0
        %350 = vmatpush2.msra.mxu0 0.0
        %351 = vmatprep.subr.mxu0 0.0
        %352 = vmatpush2.msra.mxu0 0.0
        %353 = vmatprep.subr.mxu0 0.0
        %354 = vmatpush2.msra.mxu0 0.0
        %355 = vmatprep.subr.mxu0 0.0
        %356 = vmatpush2.msra.mxu0 0.0
        %357 = vmatprep.subr.mxu0 0.0
        %358 = vmatpush2.msra.mxu0 0.0
        %359 = vmatprep.subr.mxu0 0.0
        %360 = vmatpush2.msra.mxu0 0.0
        %361 = vmatprep.subr.mxu0 0.0
        %362 = vmatpush2.msra.mxu0 0.0
        %363 = vmatprep.subr.mxu0 0.0
        %364 = vmatpush2.msra.mxu0 0.0
        %365 = vmatprep.subr.mxu0 0.0
        %366 = vmatpush2.msra.mxu0 0.0
        %367 = vmatprep.subr.mxu0 0.0
        %368 = vmatpush2.msra.mxu0 0.0
        %369 = vmatprep.subr.mxu0 0.0
        %370 = vmatpush2.msra.mxu0 0.0
        %371 = vmatprep.subr.mxu0 0.0
        %372 = vmatpush2.msra.mxu0 0.0
        %373 = vmatprep.subr.mxu0 0.0
        %374 = vmatpush2.msra.mxu0 0.0
        %375 = vmatprep.subr.mxu0 0.0
        %376 = vmatpush2.msra.mxu0 0.0
        %377 = vmatprep.mubr.f32.mxu0 0.0
        %378 = vmatmul.mubr.f32.gmra.mxu0 %v290
        %v379 = vpop.f32.mrf.mxu0
        %v380 = vadd.f32 0.0, %v379
        %v381 = vpop.f32.mrf.mxu0
        %v382 = vadd.f32 0.0, %v381
        %383 = vmatprep.mubr.f32.mxu0 0.0
        %384 = vmatmul.mubr.f32.gmra.mxu0 %v293
        %v385 = vpop.f32.mrf.mxu0
        %v386 = vadd.f32 0.0, %v385
        %v387 = vpop.f32.mrf.mxu0
        %v388 = vadd.f32 0.0, %v387
        %389 = vmatprep.mubr.f32.mxu0 0.0
        %390 = vmatmul.mubr.f32.gmra.mxu0 %v296
        %v391 = vpop.f32.mrf.mxu0
        %v392 = vadd.f32 0.0, %v391
        %v393 = vpop.f32.mrf.mxu0
        %v394 = vadd.f32 0.0, %v393
        %395 = vmatprep.mubr.f32.mxu0 0.0
        %396 = vmatmul.mubr.f32.gmra.mxu0 %v299
        %v397 = vpop.f32.mrf.mxu0
        %v398 = vadd.f32 0.0, %v397
        %v399 = vpop.f32.mrf.mxu0
        %v400 = vadd.f32 0.0, %v399
        %401 = vmatprep.mubr.f32.mxu0 0.0
        %402 = vmatmul.mubr.f32.gmra.mxu0 %v302
        %v403 = vpop.f32.mrf.mxu0
        %v404 = vadd.f32 0.0, %v403
        %v405 = vpop.f32.mrf.mxu0
        %v406 = vadd.f32 0.0, %v405
        %407 = vmatprep.mubr.f32.mxu0 0.0
        %408 = vmatmul.mubr.f32.gmra.mxu0 %v305
        %v409 = vpop.f32.mrf.mxu0
        %v410 = vadd.f32 0.0, %v409
        %v411 = vpop.f32.mrf.mxu0
        %v412 = vadd.f32 0.0, %v411
        %413 = vmatprep.mubr.f32.mxu0 0.0
        %414 = vmatmul.mubr.f32.gmra.mxu0 %v308
        %v415 = vpop.f32.mrf.mxu0
        %v416 = vadd.f32 0.0, %v415
        %v417 = vpop.f32.mrf.mxu0
        %v418 = vadd.f32 0.0, %v417
        %419 = vmatprep.mubr.f32.mxu0 0.0
        %420 = vmatmul.mubr.f32.gmra.mxu0 %v311
        %v421 = vpop.f32.mrf.mxu0
        %v422 = vadd.f32 0.0, %v421
        %v423 = vpop.f32.mrf.mxu0
        %v424 = vadd.f32 0.0, %v423
        %425 = vdwg.mxu0
        %426 = vmatprep.subr.mxu0 0.0
        %427 = vmatpush1.msra.mxu0 0.0
        %428 = vmatprep.subr.mxu0 0.0
        %429 = vmatpush1.msra.mxu0 0.0
        %430 = vmatprep.subr.mxu0 0.0
        %431 = vmatpush1.msra.mxu0 0.0
        %432 = vmatprep.subr.mxu0 0.0
        %433 = vmatpush1.msra.mxu0 0.0
        %434 = vmatprep.subr.mxu0 0.0
        %435 = vmatpush1.msra.mxu0 0.0
        %436 = vmatprep.subr.mxu0 0.0
        %437 = vmatpush1.msra.mxu0 0.0
        %438 = vmatprep.subr.mxu0 0.0
        %439 = vmatpush1.msra.mxu0 0.0
        %440 = vmatprep.subr.mxu0 0.0
        %441 = vmatpush1.msra.mxu0 0.0
        %442 = vmatprep.subr.mxu0 %v283
        %443 = vmatpush1.msra.mxu0 %v282
        %444 = vmatprep.subr.mxu0 %v275
        %445 = vmatpush1.msra.mxu0 %v274
        %446 = vmatprep.subr.mxu0 %v267
        %447 = vmatpush1.msra.mxu0 %v266
        %448 = vmatprep.subr.mxu0 %v259
        %449 = vmatpush1.msra.mxu0 %v258
        %450 = vmatprep.subr.mxu0 %v251
        %451 = vmatpush1.msra.mxu0 %v250
        %452 = vmatprep.subr.mxu0 %v243
        %453 = vmatpush1.msra.mxu0 %v242
        %454 = vmatprep.subr.mxu0 %v235
        %455 = vmatpush1.msra.mxu0 %v234
        %456 = vmatprep.subr.mxu0 %v227
        %457 = vmatpush1.msra.mxu0 %v226
        %458 = vmatprep.subr.mxu0 0.0
        %459 = vmatpush2.msra.mxu0 0.0
        %460 = vmatprep.subr.mxu0 0.0
        %461 = vmatpush2.msra.mxu0 0.0
        %462 = vmatprep.subr.mxu0 0.0
        %463 = vmatpush2.msra.mxu0 0.0
        %464 = vmatprep.subr.mxu0 0.0
        %465 = vmatpush2.msra.mxu0 0.0
        %466 = vmatprep.subr.mxu0 0.0
        %467 = vmatpush2.msra.mxu0 0.0
        %468 = vmatprep.subr.mxu0 0.0
        %469 = vmatpush2.msra.mxu0 0.0
        %470 = vmatprep.subr.mxu0 0.0
        %471 = vmatpush2.msra.mxu0 0.0
        %472 = vmatprep.subr.mxu0 0.0
        %473 = vmatpush2.msra.mxu0 0.0
        %474 = vmatprep.subr.mxu0 0.0
        %475 = vmatpush2.msra.mxu0 0.0
        %476 = vmatprep.subr.mxu0 0.0
        %477 = vmatpush2.msra.mxu0 0.0
        %478 = vmatprep.subr.mxu0 0.0
        %479 = vmatpush2.msra.mxu0 0.0
        %480 = vmatprep.subr.mxu0 0.0
        %481 = vmatpush2.msra.mxu0 0.0
        %482 = vmatprep.subr.mxu0 0.0
        %483 = vmatpush2.msra.mxu0 0.0
        %484 = vmatprep.subr.mxu0 0.0
        %485 = vmatpush2.msra.mxu0 0.0
        %486 = vmatprep.subr.mxu0 0.0
        %487 = vmatpush2.msra.mxu0 0.0
        %488 = vmatprep.subr.mxu0 0.0
        %489 = vmatpush2.msra.mxu0 0.0
        %490 = vmatprep.mubr.f32.mxu0 0.0
        %491 = vmatmul.mubr.f32.gmra.mxu0 %v290
        %v492 = vpop.f32.mrf.mxu0
        %v493 = vadd.f32 0.0, %v492
        %v494 = vpop.f32.mrf.mxu0
        %v495 = vadd.f32 0.0, %v494
        %496 = vmatprep.mubr.f32.mxu0 0.0
        %497 = vmatmul.mubr.f32.gmra.mxu0 %v293
        %v498 = vpop.f32.mrf.mxu0
        %v499 = vadd.f32 0.0, %v498
        %v500 = vpop.f32.mrf.mxu0
        %v501 = vadd.f32 0.0, %v500
        %502 = vmatprep.mubr.f32.mxu0 0.0
        %503 = vmatmul.mubr.f32.gmra.mxu0 %v296
        %v504 = vpop.f32.mrf.mxu0
        %v505 = vadd.f32 0.0, %v504
        %v506 = vpop.f32.mrf.mxu0
        %v507 = vadd.f32 0.0, %v506
        %508 = vmatprep.mubr.f32.mxu0 0.0
        %509 = vmatmul.mubr.f32.gmra.mxu0 %v299
        %v510 = vpop.f32.mrf.mxu0
        %v511 = vadd.f32 0.0, %v510
        %v512 = vpop.f32.mrf.mxu0
        %v513 = vadd.f32 0.0, %v512
        %514 = vmatprep.mubr.f32.mxu0 0.0
        %515 = vmatmul.mubr.f32.gmra.mxu0 %v302
        %v516 = vpop.f32.mrf.mxu0
        %v517 = vadd.f32 0.0, %v516
        %v518 = vpop.f32.mrf.mxu0
        %v519 = vadd.f32 0.0, %v518
        %520 = vmatprep.mubr.f32.mxu0 0.0
        %521 = vmatmul.mubr.f32.gmra.mxu0 %v305
        %v522 = vpop.f32.mrf.mxu0
        %v523 = vadd.f32 0.0, %v522
        %v524 = vpop.f32.mrf.mxu0
        %v525 = vadd.f32 0.0, %v524
        %526 = vmatprep.mubr.f32.mxu0 0.0
        %527 = vmatmul.mubr.f32.gmra.mxu0 %v308
        %v528 = vpop.f32.mrf.mxu0
        %v529 = vadd.f32 0.0, %v528
        %v530 = vpop.f32.mrf.mxu0
        %v531 = vadd.f32 0.0, %v530
        %532 = vmatprep.mubr.f32.mxu0 0.0
        %533 = vmatmul.mubr.f32.gmra.mxu0 %v311
        %v534 = vpop.f32.mrf.mxu0
        %v535 = vadd.f32 0.0, %v534
        %v536 = vpop.f32.mrf.mxu0
        %v537 = vadd.f32 0.0, %v536
        %538 = vdwg.mxu0
        %539 = vmatprep.subr.mxu0 0.0
        %540 = vmatpush1.msra.mxu0 0.0
        %541 = vmatprep.subr.mxu0 0.0
        %542 = vmatpush1.msra.mxu0 0.0
        %543 = vmatprep.subr.mxu0 0.0
        %544 = vmatpush1.msra.mxu0 0.0
        %545 = vmatprep.subr.mxu0 0.0
        %546 = vmatpush1.msra.mxu0 0.0
        %547 = vmatprep.subr.mxu0 0.0
        %548 = vmatpush1.msra.mxu0 0.0
        %549 = vmatprep.subr.mxu0 0.0
        %550 = vmatpush1.msra.mxu0 0.0
        %551 = vmatprep.subr.mxu0 0.0
        %552 = vmatpush1.msra.mxu0 0.0
        %553 = vmatprep.subr.mxu0 0.0
        %554 = vmatpush1.msra.mxu0 0.0
        %555 = vmatprep.subr.mxu0 %v285
        %556 = vmatpush1.msra.mxu0 %v284
        %557 = vmatprep.subr.mxu0 %v277
        %558 = vmatpush1.msra.mxu0 %v276
        %559 = vmatprep.subr.mxu0 %v269
        %560 = vmatpush1.msra.mxu0 %v268
        %561 = vmatprep.subr.mxu0 %v261
        %562 = vmatpush1.msra.mxu0 %v260
        %563 = vmatprep.subr.mxu0 %v253
        %564 = vmatpush1.msra.mxu0 %v252
        %565 = vmatprep.subr.mxu0 %v245
        %566 = vmatpush1.msra.mxu0 %v244
        %567 = vmatprep.subr.mxu0 %v237
        %568 = vmatpush1.msra.mxu0 %v236
        %569 = vmatprep.subr.mxu0 %v229
        %570 = vmatpush1.msra.mxu0 %v228
        %571 = vmatprep.subr.mxu0 0.0
        %572 = vmatpush2.msra.mxu0 0.0
        %573 = vmatprep.subr.mxu0 0.0
        %574 = vmatpush2.msra.mxu0 0.0
        %575 = vmatprep.subr.mxu0 0.0
        %576 = vmatpush2.msra.mxu0 0.0
        %577 = vmatprep.subr.mxu0 0.0
        %578 = vmatpush2.msra.mxu0 0.0
        %579 = vmatprep.subr.mxu0 0.0
        %580 = vmatpush2.msra.mxu0 0.0
        %581 = vmatprep.subr.mxu0 0.0
        %582 = vmatpush2.msra.mxu0 0.0
        %583 = vmatprep.subr.mxu0 0.0
        %584 = vmatpush2.msra.mxu0 0.0
        %585 = vmatprep.subr.mxu0 0.0
        %586 = vmatpush2.msra.mxu0 0.0
        %587 = vmatprep.subr.mxu0 0.0
        %588 = vmatpush2.msra.mxu0 0.0
        %589 = vmatprep.subr.mxu0 0.0
        %590 = vmatpush2.msra.mxu0 0.0
        %591 = vmatprep.subr.mxu0 0.0
        %592 = vmatpush2.msra.mxu0 0.0
        %593 = vmatprep.subr.mxu0 0.0
        %594 = vmatpush2.msra.mxu0 0.0
        %595 = vmatprep.subr.mxu0 0.0
        %596 = vmatpush2.msra.mxu0 0.0
        %597 = vmatprep.subr.mxu0 0.0
        %598 = vmatpush2.msra.mxu0 0.0
        %599 = vmatprep.subr.mxu0 0.0
        %600 = vmatpush2.msra.mxu0 0.0
        %601 = vmatprep.subr.mxu0 0.0
        %602 = vmatpush2.msra.mxu0 0.0
        %603 = vmatprep.mubr.f32.mxu0 0.0
        %604 = vmatmul.mubr.f32.gmra.mxu0 %v290
        %v605 = vpop.f32.mrf.mxu0
        %v606 = vadd.f32 0.0, %v605
        %v607 = vpop.f32.mrf.mxu0
        %v608 = vadd.f32 0.0, %v607
        %609 = vmatprep.mubr.f32.mxu0 0.0
        %610 = vmatmul.mubr.f32.gmra.mxu0 %v293
        %v611 = vpop.f32.mrf.mxu0
        %v612 = vadd.f32 0.0, %v611
        %v613 = vpop.f32.mrf.mxu0
        %v614 = vadd.f32 0.0, %v613
        %615 = vmatprep.mubr.f32.mxu0 0.0
        %616 = vmatmul.mubr.f32.gmra.mxu0 %v296
        %v617 = vpop.f32.mrf.mxu0
        %v618 = vadd.f32 0.0, %v617
        %v619 = vpop.f32.mrf.mxu0
        %v620 = vadd.f32 0.0, %v619
        %621 = vmatprep.mubr.f32.mxu0 0.0
        %622 = vmatmul.mubr.f32.gmra.mxu0 %v299
        %v623 = vpop.f32.mrf.mxu0
        %v624 = vadd.f32 0.0, %v623
        %v625 = vpop.f32.mrf.mxu0
        %v626 = vadd.f32 0.0, %v625
        %627 = vmatprep.mubr.f32.mxu0 0.0
        %628 = vmatmul.mubr.f32.gmra.mxu0 %v302
        %v629 = vpop.f32.mrf.mxu0
        %v630 = vadd.f32 0.0, %v629
        %v631 = vpop.f32.mrf.mxu0
        %v632 = vadd.f32 0.0, %v631
        %633 = vmatprep.mubr.f32.mxu0 0.0
        %634 = vmatmul.mubr.f32.gmra.mxu0 %v305
        %v635 = vpop.f32.mrf.mxu0
        %v636 = vadd.f32 0.0, %v635
        %v637 = vpop.f32.mrf.mxu0
        %v638 = vadd.f32 0.0, %v637
        %639 = vmatprep.mubr.f32.mxu0 0.0
        %640 = vmatmul.mubr.f32.gmra.mxu0 %v308
        %v641 = vpop.f32.mrf.mxu0
        %v642 = vadd.f32 0.0, %v641
        %v643 = vpop.f32.mrf.mxu0
        %v644 = vadd.f32 0.0, %v643
        %645 = vmatprep.mubr.f32.mxu0 0.0
        %646 = vmatmul.mubr.f32.gmra.mxu0 %v311
        %v647 = vpop.f32.mrf.mxu0
        %v648 = vadd.f32 0.0, %v647
        %v649 = vpop.f32.mrf.mxu0
        %v650 = vadd.f32 0.0, %v649
        %651 = vdwg.mxu0
        %652 = vmatprep.subr.mxu0 0.0
        %653 = vmatpush1.msra.mxu0 0.0
        %654 = vmatprep.subr.mxu0 0.0
        %655 = vmatpush1.msra.mxu0 0.0
        %656 = vmatprep.subr.mxu0 0.0
        %657 = vmatpush1.msra.mxu0 0.0
        %658 = vmatprep.subr.mxu0 0.0
        %659 = vmatpush1.msra.mxu0 0.0
        %660 = vmatprep.subr.mxu0 0.0
        %661 = vmatpush1.msra.mxu0 0.0
        %662 = vmatprep.subr.mxu0 0.0
        %663 = vmatpush1.msra.mxu0 0.0
        %664 = vmatprep.subr.mxu0 0.0
        %665 = vmatpush1.msra.mxu0 0.0
        %666 = vmatprep.subr.mxu0 0.0
        %667 = vmatpush1.msra.mxu0 0.0
        %668 = vmatprep.subr.mxu0 %v287
        %669 = vmatpush1.msra.mxu0 %v286
        %670 = vmatprep.subr.mxu0 %v279
        %671 = vmatpush1.msra.mxu0 %v278
        %672 = vmatprep.subr.mxu0 %v271
        %673 = vmatpush1.msra.mxu0 %v270
        %674 = vmatprep.subr.mxu0 %v263
        %675 = vmatpush1.msra.mxu0 %v262
        %676 = vmatprep.subr.mxu0 %v255
        %677 = vmatpush1.msra.mxu0 %v254
        %678 = vmatprep.subr.mxu0 %v247
        %679 = vmatpush1.msra.mxu0 %v246
        %680 = vmatprep.subr.mxu0 %v239
        %681 = vmatpush1.msra.mxu0 %v238
        %682 = vmatprep.subr.mxu0 %v231
        %683 = vmatpush1.msra.mxu0 %v230
        %684 = vmatprep.subr.mxu0 0.0
        %685 = vmatpush2.msra.mxu0 0.0
        %686 = vmatprep.subr.mxu0 0.0
        %687 = vmatpush2.msra.mxu0 0.0
        %688 = vmatprep.subr.mxu0 0.0
        %689 = vmatpush2.msra.mxu0 0.0
        %690 = vmatprep.subr.mxu0 0.0
        %691 = vmatpush2.msra.mxu0 0.0
        %692 = vmatprep.subr.mxu0 0.0
        %693 = vmatpush2.msra.mxu0 0.0
        %694 = vmatprep.subr.mxu0 0.0
        %695 = vmatpush2.msra.mxu0 0.0
        %696 = vmatprep.subr.mxu0 0.0
        %697 = vmatpush2.msra.mxu0 0.0
        %698 = vmatprep.subr.mxu0 0.0
        %699 = vmatpush2.msra.mxu0 0.0
        %700 = vmatprep.subr.mxu0 0.0
        %701 = vmatpush2.msra.mxu0 0.0
        %702 = vmatprep.subr.mxu0 0.0
        %703 = vmatpush2.msra.mxu0 0.0
        %704 = vmatprep.subr.mxu0 0.0
        %705 = vmatpush2.msra.mxu0 0.0
        %706 = vmatprep.subr.mxu0 0.0
        %707 = vmatpush2.msra.mxu0 0.0
        %708 = vmatprep.subr.mxu0 0.0
        %709 = vmatpush2.msra.mxu0 0.0
        %710 = vmatprep.subr.mxu0 0.0
        %711 = vmatpush2.msra.mxu0 0.0
        %712 = vmatprep.subr.mxu0 0.0
        %713 = vmatpush2.msra.mxu0 0.0
        %714 = vmatprep.subr.mxu0 0.0
        %715 = vmatpush2.msra.mxu0 0.0
        %716 = vmatprep.mubr.f32.mxu0 0.0
        %717 = vmatmul.mubr.f32.gmra.mxu0 %v290
        %v718 = vpop.f32.mrf.mxu0
        %v719 = vadd.f32 0.0, %v718
        %v720 = vpop.f32.mrf.mxu0
        %v721 = vadd.f32 0.0, %v720
        %722 = vmatprep.mubr.f32.mxu0 0.0
        %723 = vmatmul.mubr.f32.gmra.mxu0 %v293
        %v724 = vpop.f32.mrf.mxu0
        %v725 = vadd.f32 0.0, %v724
        %v726 = vpop.f32.mrf.mxu0
        %v727 = vadd.f32 0.0, %v726
        %728 = vmatprep.mubr.f32.mxu0 0.0
        %729 = vmatmul.mubr.f32.gmra.mxu0 %v296
        %v730 = vpop.f32.mrf.mxu0
        %v731 = vadd.f32 0.0, %v730
        %v732 = vpop.f32.mrf.mxu0
        %v733 = vadd.f32 0.0, %v732
        %734 = vmatprep.mubr.f32.mxu0 0.0
        %735 = vmatmul.mubr.f32.gmra.mxu0 %v299
        %v736 = vpop.f32.mrf.mxu0
        %v737 = vadd.f32 0.0, %v736
        %v738 = vpop.f32.mrf.mxu0
        %v739 = vadd.f32 0.0, %v738
        %740 = vmatprep.mubr.f32.mxu0 0.0
        %741 = vmatmul.mubr.f32.gmra.mxu0 %v302
        %v742 = vpop.f32.mrf.mxu0
        %v743 = vadd.f32 0.0, %v742
        %v744 = vpop.f32.mrf.mxu0
        %v745 = vadd.f32 0.0, %v744
        %746 = vmatprep.mubr.f32.mxu0 0.0
        %747 = vmatmul.mubr.f32.gmra.mxu0 %v305
        %v748 = vpop.f32.mrf.mxu0
        %v749 = vadd.f32 0.0, %v748
        %v750 = vpop.f32.mrf.mxu0
        %v751 = vadd.f32 0.0, %v750
        %752 = vmatprep.mubr.f32.mxu0 0.0
        %753 = vmatmul.mubr.f32.gmra.mxu0 %v308
        %v754 = vpop.f32.mrf.mxu0
        %v755 = vadd.f32 0.0, %v754
        %v756 = vpop.f32.mrf.mxu0
        %v757 = vadd.f32 0.0, %v756
        %758 = vmatprep.mubr.f32.mxu0 0.0
        %759 = vmatmul.mubr.f32.gmra.mxu0 %v311
        %v760 = vpop.f32.mrf.mxu0
        %v761 = vadd.f32 0.0, %v760
        %v762 = vpop.f32.mrf.mxu0
        %v763 = vadd.f32 0.0, %v762
        %764 = vdwg.mxu0
        %765 = vst [vmem:[#allocation2] sm:$0xff] %v380
        %766 = vst [vmem:[#allocation2 + $0x8] sm:$0xff] %v382
        %767 = vst [vmem:[#allocation2 + $0x10] sm:$0xff] %v493
        %768 = vst [vmem:[#allocation2 + $0x18] sm:$0xff] %v495
        %769 = vst [vmem:[#allocation2 + $0x20] sm:$0xff] %v606
        %770 = vst [vmem:[#allocation2 + $0x28] sm:$0xff] %v608
        %771 = vst [vmem:[#allocation2 + $0x30] sm:$0xff] %v719
        %772 = vst [vmem:[#allocation2 + $0x38] sm:$0xff] %v721
        %773 = vst [vmem:[#allocation2 + $0x40] sm:$0xff] %v386
        %774 = vst [vmem:[#allocation2 + $0x48] sm:$0xff] %v388
        %775 = vst [vmem:[#allocation2 + $0x50] sm:$0xff] %v499
        %776 = vst [vmem:[#allocation2 + $0x58] sm:$0xff] %v501
        %777 = vst [vmem:[#allocation2 + $0x60] sm:$0xff] %v612
        %778 = vst [vmem:[#allocation2 + $0x68] sm:$0xff] %v614
        %779 = vst [vmem:[#allocation2 + $0x70] sm:$0xff] %v725
        %780 = vst [vmem:[#allocation2 + $0x78] sm:$0xff] %v727
        %781 = vst [vmem:[#allocation2 + $0x80] sm:$0xff] %v392
        %782 = vst [vmem:[#allocation2 + $0x88] sm:$0xff] %v394
        %783 = vst [vmem:[#allocation2 + $0x90] sm:$0xff] %v505
        %784 = vst [vmem:[#allocation2 + $0x98] sm:$0xff] %v507
        %785 = vst [vmem:[#allocation2 + $0xa0] sm:$0xff] %v618
        %786 = vst [vmem:[#allocation2 + $0xa8] sm:$0xff] %v620
        %787 = vst [vmem:[#allocation2 + $0xb0] sm:$0xff] %v731
        %788 = vst [vmem:[#allocation2 + $0xb8] sm:$0xff] %v733
        %789 = vst [vmem:[#allocation2 + $0xc0] sm:$0xff] %v398
        %790 = vst [vmem:[#allocation2 + $0xc8] sm:$0xff] %v400
        %791 = vst [vmem:[#allocation2 + $0xd0] sm:$0xff] %v511
        %792 = vst [vmem:[#allocation2 + $0xd8] sm:$0xff] %v513
        %793 = vst [vmem:[#allocation2 + $0xe0] sm:$0xff] %v624
        %794 = vst [vmem:[#allocation2 + $0xe8] sm:$0xff] %v626
        %795 = vst [vmem:[#allocation2 + $0xf0] sm:$0xff] %v737
        %796 = vst [vmem:[#allocation2 + $0xf8] sm:$0xff] %v739
        %797 = vst [vmem:[#allocation2 + $0x100] sm:$0xff] %v404
        %798 = vst [vmem:[#allocation2 + $0x108] sm:$0xff] %v406
        %799 = vst [vmem:[#allocation2 + $0x110] sm:$0xff] %v517
        %800 = vst [vmem:[#allocation2 + $0x118] sm:$0xff] %v519
        %801 = vst [vmem:[#allocation2 + $0x120] sm:$0xff] %v630
        %802 = vst [vmem:[#allocation2 + $0x128] sm:$0xff] %v632
        %803 = vst [vmem:[#allocation2 + $0x130] sm:$0xff] %v743
        %804 = vst [vmem:[#allocation2 + $0x138] sm:$0xff] %v745
        %805 = vst [vmem:[#allocation2 + $0x140] sm:$0xff] %v410
        %806 = vst [vmem:[#allocation2 + $0x148] sm:$0xff] %v412
        %807 = vst [vmem:[#allocation2 + $0x150] sm:$0xff] %v523
        %808 = vst [vmem:[#allocation2 + $0x158] sm:$0xff] %v525
        %809 = vst [vmem:[#allocation2 + $0x160] sm:$0xff] %v636
        %810 = vst [vmem:[#allocation2 + $0x168] sm:$0xff] %v638
        %811 = vst [vmem:[#allocation2 + $0x170] sm:$0xff] %v749
        %812 = vst [vmem:[#allocation2 + $0x178] sm:$0xff] %v751
        %813 = vst [vmem:[#allocation2 + $0x180] sm:$0xff] %v416
        %814 = vst [vmem:[#allocation2 + $0x188] sm:$0xff] %v418
        %815 = vst [vmem:[#allocation2 + $0x190] sm:$0xff] %v529
        %816 = vst [vmem:[#allocation2 + $0x198] sm:$0xff] %v531
        %817 = vst [vmem:[#allocation2 + $0x1a0] sm:$0xff] %v642
        %818 = vst [vmem:[#allocation2 + $0x1a8] sm:$0xff] %v644
        %819 = vst [vmem:[#allocation2 + $0x1b0] sm:$0xff] %v755
        %820 = vst [vmem:[#allocation2 + $0x1b8] sm:$0xff] %v757
        %821 = vst [vmem:[#allocation2 + $0x1c0] sm:$0xff] %v422
        %822 = vst [vmem:[#allocation2 + $0x1c8] sm:$0xff] %v424
        %823 = vst [vmem:[#allocation2 + $0x1d0] sm:$0xff] %v535
        %824 = vst [vmem:[#allocation2 + $0x1d8] sm:$0xff] %v537
        %825 = vst [vmem:[#allocation2 + $0x1e0] sm:$0xff] %v648
        %826 = vst [vmem:[#allocation2 + $0x1e8] sm:$0xff] %v650
        %827 = vst [vmem:[#allocation2 + $0x1f0] sm:$0xff] %v761
        %828 = vst [vmem:[#allocation2 + $0x1f8] sm:$0xff] %v763
        %v829 = vld [vmem:[#allocation2] sm:$0xff]
        %v830 = vld [vmem:[#allocation2 + $0x8] sm:$0xff]
        %v831 = vld [vmem:[#allocation2 + $0x10] sm:$0xff]
        %v832 = vld [vmem:[#allocation2 + $0x18] sm:$0xff]
        %v833 = vld [vmem:[#allocation2 + $0x20] sm:$0xff]
        %v834 = vld [vmem:[#allocation2 + $0x28] sm:$0xff]
        %v835 = vld [vmem:[#allocation2 + $0x30] sm:$0xff]
        %v836 = vld [vmem:[#allocation2 + $0x38] sm:$0xff]
        %v837 = vld [vmem:[#allocation2 + $0x40] sm:$0xff]
        %v838 = vld [vmem:[#allocation2 + $0x48] sm:$0xff]
        %v839 = vld [vmem:[#allocation2 + $0x50] sm:$0xff]
        %v840 = vld [vmem:[#allocation2 + $0x58] sm:$0xff]
        %v841 = vld [vmem:[#allocation2 + $0x60] sm:$0xff]
        %v842 = vld [vmem:[#allocation2 + $0x68] sm:$0xff]
        %v843 = vld [vmem:[#allocation2 + $0x70] sm:$0xff]
        %v844 = vld [vmem:[#allocation2 + $0x78] sm:$0xff]
        %v845 = vld [vmem:[#allocation2 + $0x80] sm:$0xff]
        %v846 = vld [vmem:[#allocation2 + $0x88] sm:$0xff]
        %v847 = vld [vmem:[#allocation2 + $0x90] sm:$0xff]
        %v848 = vld [vmem:[#allocation2 + $0x98] sm:$0xff]
        %v849 = vld [vmem:[#allocation2 + $0xa0] sm:$0xff]
        %v850 = vld [vmem:[#allocation2 + $0xa8] sm:$0xff]
        %v851 = vld [vmem:[#allocation2 + $0xb0] sm:$0xff]
        %v852 = vld [vmem:[#allocation2 + $0xb8] sm:$0xff]
        %v853 = vld [vmem:[#allocation2 + $0xc0] sm:$0xff]
        %v854 = vld [vmem:[#allocation2 + $0xc8] sm:$0xff]
        %v855 = vld [vmem:[#allocation2 + $0xd0] sm:$0xff]
        %v856 = vld [vmem:[#allocation2 + $0xd8] sm:$0xff]
        %v857 = vld [vmem:[#allocation2 + $0xe0] sm:$0xff]
        %v858 = vld [vmem:[#allocation2 + $0xe8] sm:$0xff]
        %v859 = vld [vmem:[#allocation2 + $0xf0] sm:$0xff]
        %v860 = vld [vmem:[#allocation2 + $0xf8] sm:$0xff]
        %v861 = vld [vmem:[#allocation2 + $0x100] sm:$0xff]
        %v862 = vld [vmem:[#allocation2 + $0x108] sm:$0xff]
        %v863 = vld [vmem:[#allocation2 + $0x110] sm:$0xff]
        %v864 = vld [vmem:[#allocation2 + $0x118] sm:$0xff]
        %v865 = vld [vmem:[#allocation2 + $0x120] sm:$0xff]
        %v866 = vld [vmem:[#allocation2 + $0x128] sm:$0xff]
        %v867 = vld [vmem:[#allocation2 + $0x130] sm:$0xff]
        %v868 = vld [vmem:[#allocation2 + $0x138] sm:$0xff]
        %v869 = vld [vmem:[#allocation2 + $0x140] sm:$0xff]
        %v870 = vld [vmem:[#allocation2 + $0x148] sm:$0xff]
        %v871 = vld [vmem:[#allocation2 + $0x150] sm:$0xff]
        %v872 = vld [vmem:[#allocation2 + $0x158] sm:$0xff]
        %v873 = vld [vmem:[#allocation2 + $0x160] sm:$0xff]
        %v874 = vld [vmem:[#allocation2 + $0x168] sm:$0xff]
        %v875 = vld [vmem:[#allocation2 + $0x170] sm:$0xff]
        %v876 = vld [vmem:[#allocation2 + $0x178] sm:$0xff]
        %v877 = vld [vmem:[#allocation2 + $0x180] sm:$0xff]
        %v878 = vld [vmem:[#allocation2 + $0x188] sm:$0xff]
        %v879 = vld [vmem:[#allocation2 + $0x190] sm:$0xff]
        %v880 = vld [vmem:[#allocation2 + $0x198] sm:$0xff]
        %v881 = vld [vmem:[#allocation2 + $0x1a0] sm:$0xff]
        %v882 = vld [vmem:[#allocation2 + $0x1a8] sm:$0xff]
        %v883 = vld [vmem:[#allocation2 + $0x1b0] sm:$0xff]
        %v884 = vld [vmem:[#allocation2 + $0x1b8] sm:$0xff]
        %v885 = vld [vmem:[#allocation2 + $0x1c0] sm:$0xff]
        %v886 = vld [vmem:[#allocation2 + $0x1c8] sm:$0xff]
        %v887 = vld [vmem:[#allocation2 + $0x1d0] sm:$0xff]
        %v888 = vld [vmem:[#allocation2 + $0x1d8] sm:$0xff]
        %v889 = vld [vmem:[#allocation2 + $0x1e0] sm:$0xff]
        %v890 = vld [vmem:[#allocation2 + $0x1e8] sm:$0xff]
        %v891 = vld [vmem:[#allocation2 + $0x1f0] sm:$0xff]
        %v892 = vld [vmem:[#allocation2 + $0x1f8] sm:$0xff]
        %v893 = vadd.f32 %v829, %v830
        %v894 = vadd.f32 %v893, %v831
        %v895 = vadd.f32 %v894, %v832
        %v896 = vadd.f32 %v895, %v833
        %v897 = vadd.f32 %v896, %v834
        %v898 = vadd.f32 %v897, %v835
        %v899 = vadd.f32 %v898, %v836
        %900 = vadd.xlane.f32.xlu0 %v899
        %v901 = vpop.xlane.xlu0 %900
        %v902 = vadd.f32 %v837, %v838
        %v903 = vadd.f32 %v902, %v839
        %v904 = vadd.f32 %v903, %v840
        %v905 = vadd.f32 %v904, %v841
        %v906 = vadd.f32 %v905, %v842
        %v907 = vadd.f32 %v906, %v843
        %v908 = vadd.f32 %v907, %v844
        %909 = vadd.xlane.f32.xlu0 %v908
        %v910 = vpop.xlane.xlu0 %909
        %v911 = vadd.f32 %v845, %v846
        %v912 = vadd.f32 %v911, %v847
        %v913 = vadd.f32 %v912, %v848
        %v914 = vadd.f32 %v913, %v849
        %v915 = vadd.f32 %v914, %v850
        %v916 = vadd.f32 %v915, %v851
        %v917 = vadd.f32 %v916, %v852
        %918 = vadd.xlane.f32.xlu0 %v917
        %v919 = vpop.xlane.xlu0 %918
        %v920 = vadd.f32 %v853, %v854
        %v921 = vadd.f32 %v920, %v855
        %v922 = vadd.f32 %v921, %v856
        %v923 = vadd.f32 %v922, %v857
        %v924 = vadd.f32 %v923, %v858
        %v925 = vadd.f32 %v924, %v859
        %v926 = vadd.f32 %v925, %v860
        %927 = vadd.xlane.f32.xlu0 %v926
        %v928 = vpop.xlane.xlu0 %927
        %v929 = vadd.f32 %v861, %v862
        %v930 = vadd.f32 %v929, %v863
        %v931 = vadd.f32 %v930, %v864
        %v932 = vadd.f32 %v931, %v865
        %v933 = vadd.f32 %v932, %v866
        %v934 = vadd.f32 %v933, %v867
        %v935 = vadd.f32 %v934, %v868
        %936 = vadd.xlane.f32.xlu0 %v935
        %v937 = vpop.xlane.xlu0 %936
        %v938 = vadd.f32 %v869, %v870
        %v939 = vadd.f32 %v938, %v871
        %v940 = vadd.f32 %v939, %v872
        %v941 = vadd.f32 %v940, %v873
        %v942 = vadd.f32 %v941, %v874
        %v943 = vadd.f32 %v942, %v875
        %v944 = vadd.f32 %v943, %v876
        %945 = vadd.xlane.f32.xlu0 %v944
        %v946 = vpop.xlane.xlu0 %945
        %v947 = vadd.f32 %v877, %v878
        %v948 = vadd.f32 %v947, %v879
        %v949 = vadd.f32 %v948, %v880
        %v950 = vadd.f32 %v949, %v881
        %v951 = vadd.f32 %v950, %v882
        %v952 = vadd.f32 %v951, %v883
        %v953 = vadd.f32 %v952, %v884
        %954 = vadd.xlane.f32.xlu0 %v953
        %v955 = vpop.xlane.xlu0 %954
        %v956 = vadd.f32 %v885, %v886
        %v957 = vadd.f32 %v956, %v887
        %v958 = vadd.f32 %v957, %v888
        %v959 = vadd.f32 %v958, %v889
        %v960 = vadd.f32 %v959, %v890
        %v961 = vadd.f32 %v960, %v891
        %v962 = vadd.f32 %v961, %v892
        %963 = vadd.xlane.f32.xlu0 %v962
        %v964 = vpop.xlane.xlu0 %963
        %v965 = vmul.f32 %v901, 0.0009765625
        %v966 = vmul.f32 %v910, 0.0009765625
        %v967 = vmul.f32 %v919, 0.0009765625
        %v968 = vmul.f32 %v928, 0.0009765625
        %v969 = vmul.f32 %v937, 0.0009765625
        %v970 = vmul.f32 %v946, 0.0009765625
        %v971 = vmul.f32 %v955, 0.0009765625
        %v972 = vmul.f32 %v964, 0.0009765625
        %v973 = vsub.f32 %v829, %v965
        %v974 = vsub.f32 %v830, %v965
        %v975 = vsub.f32 %v831, %v965
        %v976 = vsub.f32 %v832, %v965
        %v977 = vsub.f32 %v833, %v965
        %v978 = vsub.f32 %v834, %v965
        %v979 = vsub.f32 %v835, %v965
        %v980 = vsub.f32 %v836, %v965
        %v981 = vsub.f32 %v837, %v966
        %v982 = vsub.f32 %v838, %v966
        %v983 = vsub.f32 %v839, %v966
        %v984 = vsub.f32 %v840, %v966
        %v985 = vsub.f32 %v841, %v966
        %v986 = vsub.f32 %v842, %v966
        %v987 = vsub.f32 %v843, %v966
        %v988 = vsub.f32 %v844, %v966
        %v989 = vsub.f32 %v845, %v967
        %v990 = vsub.f32 %v846, %v967
        %v991 = vsub.f32 %v847, %v967
        %v992 = vsub.f32 %v848, %v967
        %v993 = vsub.f32 %v849, %v967
        %v994 = vsub.f32 %v850, %v967
        %v995 = vsub.f32 %v851, %v967
        %v996 = vsub.f32 %v852, %v967
        %v997 = vsub.f32 %v853, %v968
        %v998 = vsub.f32 %v854, %v968
        %v999 = vsub.f32 %v855, %v968
        %v1000 = vsub.f32 %v856, %v968
        %v1001 = vsub.f32 %v857, %v968
        %v1002 = vsub.f32 %v858, %v968
        %v1003 = vsub.f32 %v859, %v968
        %v1004 = vsub.f32 %v860, %v968
        %v1005 = vsub.f32 %v861, %v969
        %v1006 = vsub.f32 %v862, %v969
        %v1007 = vsub.f32 %v863, %v969
        %v1008 = vsub.f32 %v864, %v969
        %v1009 = vsub.f32 %v865, %v969
        %v1010 = vsub.f32 %v866, %v969
        %v1011 = vsub.f32 %v867, %v969
        %v1012 = vsub.f32 %v868, %v969
        %v1013 = vsub.f32 %v869, %v970
        %v1014 = vsub.f32 %v870, %v970
        %v1015 = vsub.f32 %v871, %v970
        %v1016 = vsub.f32 %v872, %v970
        %v1017 = vsub.f32 %v873, %v970
        %v1018 = vsub.f32 %v874, %v970
        %v1019 = vsub.f32 %v875, %v970
        %v1020 = vsub.f32 %v876, %v970
        %v1021 = vsub.f32 %v877, %v971
        %v1022 = vsub.f32 %v878, %v971
        %v1023 = vsub.f32 %v879, %v971
        %v1024 = vsub.f32 %v880, %v971
        %v1025 = vsub.f32 %v881, %v971
        %v1026 = vsub.f32 %v882, %v971
        %v1027 = vsub.f32 %v883, %v971
        %v1028 = vsub.f32 %v884, %v971
        %v1029 = vsub.f32 %v885, %v972
        %v1030 = vsub.f32 %v886, %v972
        %v1031 = vsub.f32 %v887, %v972
        %v1032 = vsub.f32 %v888, %v972
        %v1033 = vsub.f32 %v889, %v972
        %v1034 = vsub.f32 %v890, %v972
        %v1035 = vsub.f32 %v891, %v972
        %v1036 = vsub.f32 %v892, %v972
        %1037 = vst [vmem:[#allocation2] sm:$0xff] %v973
        %1038 = vst [vmem:[#allocation2 + $0x8] sm:$0xff] %v974
        %1039 = vst [vmem:[#allocation2 + $0x10] sm:$0xff] %v975
        %1040 = vst [vmem:[#allocation2 + $0x18] sm:$0xff] %v976
        %1041 = vst [vmem:[#allocation2 + $0x20] sm:$0xff] %v977
        %1042 = vst [vmem:[#allocation2 + $0x28] sm:$0xff] %v978
        %1043 = vst [vmem:[#allocation2 + $0x30] sm:$0xff] %v979
        %1044 = vst [vmem:[#allocation2 + $0x38] sm:$0xff] %v980
        %1045 = vst [vmem:[#allocation2 + $0x40] sm:$0xff] %v981
        %1046 = vst [vmem:[#allocation2 + $0x48] sm:$0xff] %v982
        %1047 = vst [vmem:[#allocation2 + $0x50] sm:$0xff] %v983
        %1048 = vst [vmem:[#allocation2 + $0x58] sm:$0xff] %v984
        %1049 = vst [vmem:[#allocation2 + $0x60] sm:$0xff] %v985
        %1050 = vst [vmem:[#allocation2 + $0x68] sm:$0xff] %v986
        %1051 = vst [vmem:[#allocation2 + $0x70] sm:$0xff] %v987
        %1052 = vst [vmem:[#allocation2 + $0x78] sm:$0xff] %v988
        %1053 = vst [vmem:[#allocation2 + $0x80] sm:$0xff] %v989
        %1054 = vst [vmem:[#allocation2 + $0x88] sm:$0xff] %v990
        %1055 = vst [vmem:[#allocation2 + $0x90] sm:$0xff] %v991
        %1056 = vst [vmem:[#allocation2 + $0x98] sm:$0xff] %v992
        %1057 = vst [vmem:[#allocation2 + $0xa0] sm:$0xff] %v993
        %1058 = vst [vmem:[#allocation2 + $0xa8] sm:$0xff] %v994
        %1059 = vst [vmem:[#allocation2 + $0xb0] sm:$0xff] %v995
        %1060 = vst [vmem:[#allocation2 + $0xb8] sm:$0xff] %v996
        %1061 = vst [vmem:[#allocation2 + $0xc0] sm:$0xff] %v997
        %1062 = vst [vmem:[#allocation2 + $0xc8] sm:$0xff] %v998
        %1063 = vst [vmem:[#allocation2 + $0xd0] sm:$0xff] %v999
        %1064 = vst [vmem:[#allocation2 + $0xd8] sm:$0xff] %v1000
        %1065 = vst [vmem:[#allocation2 + $0xe0] sm:$0xff] %v1001
        %1066 = vst [vmem:[#allocation2 + $0xe8] sm:$0xff] %v1002
        %1067 = vst [vmem:[#allocation2 + $0xf0] sm:$0xff] %v1003
        %1068 = vst [vmem:[#allocation2 + $0xf8] sm:$0xff] %v1004
        %1069 = vst [vmem:[#allocation2 + $0x100] sm:$0xff] %v1005
        %1070 = vst [vmem:[#allocation2 + $0x108] sm:$0xff] %v1006
        %1071 = vst [vmem:[#allocation2 + $0x110] sm:$0xff] %v1007
        %1072 = vst [vmem:[#allocation2 + $0x118] sm:$0xff] %v1008
        %1073 = vst [vmem:[#allocation2 + $0x120] sm:$0xff] %v1009
        %1074 = vst [vmem:[#allocation2 + $0x128] sm:$0xff] %v1010
        %1075 = vst [vmem:[#allocation2 + $0x130] sm:$0xff] %v1011
        %1076 = vst [vmem:[#allocation2 + $0x138] sm:$0xff] %v1012
        %1077 = vst [vmem:[#allocation2 + $0x140] sm:$0xff] %v1013
        %1078 = vst [vmem:[#allocation2 + $0x148] sm:$0xff] %v1014
        %1079 = vst [vmem:[#allocation2 + $0x150] sm:$0xff] %v1015
        %1080 = vst [vmem:[#allocation2 + $0x158] sm:$0xff] %v1016
        %1081 = vst [vmem:[#allocation2 + $0x160] sm:$0xff] %v1017
        %1082 = vst [vmem:[#allocation2 + $0x168] sm:$0xff] %v1018
        %1083 = vst [vmem:[#allocation2 + $0x170] sm:$0xff] %v1019
        %1084 = vst [vmem:[#allocation2 + $0x178] sm:$0xff] %v1020
        %1085 = vst [vmem:[#allocation2 + $0x180] sm:$0xff] %v1021
        %1086 = vst [vmem:[#allocation2 + $0x188] sm:$0xff] %v1022
        %1087 = vst [vmem:[#allocation2 + $0x190] sm:$0xff] %v1023
        %1088 = vst [vmem:[#allocation2 + $0x198] sm:$0xff] %v1024
        %1089 = vst [vmem:[#allocation2 + $0x1a0] sm:$0xff] %v1025
        %1090 = vst [vmem:[#allocation2 + $0x1a8] sm:$0xff] %v1026
        %1091 = vst [vmem:[#allocation2 + $0x1b0] sm:$0xff] %v1027
        %1092 = vst [vmem:[#allocation2 + $0x1b8] sm:$0xff] %v1028
        %1093 = vst [vmem:[#allocation2 + $0x1c0] sm:$0xff] %v1029
        %1094 = vst [vmem:[#allocation2 + $0x1c8] sm:$0xff] %v1030
        %1095 = vst [vmem:[#allocation2 + $0x1d0] sm:$0xff] %v1031
        %1096 = vst [vmem:[#allocation2 + $0x1d8] sm:$0xff] %v1032
        %1097 = vst [vmem:[#allocation2 + $0x1e0] sm:$0xff] %v1033
        %1098 = vst [vmem:[#allocation2 + $0x1e8] sm:$0xff] %v1034
        %1099 = vst [vmem:[#allocation2 + $0x1f0] sm:$0xff] %v1035
        %1100 = vst [vmem:[#allocation2 + $0x1f8] sm:$0xff] %v1036
        %v1101 = vld [vmem:[#allocation2] sm:$0xff]
        %v1102 = vld [vmem:[#allocation2 + $0x8] sm:$0xff]
        %v1103 = vld [vmem:[#allocation2 + $0x10] sm:$0xff]
        %v1104 = vld [vmem:[#allocation2 + $0x18] sm:$0xff]
        %v1105 = vld [vmem:[#allocation2 + $0x20] sm:$0xff]
        %v1106 = vld [vmem:[#allocation2 + $0x28] sm:$0xff]
        %v1107 = vld [vmem:[#allocation2 + $0x30] sm:$0xff]
        %v1108 = vld [vmem:[#allocation2 + $0x38] sm:$0xff]
        %v1109 = vld [vmem:[#allocation2 + $0x40] sm:$0xff]
        %v1110 = vld [vmem:[#allocation2 + $0x48] sm:$0xff]
        %v1111 = vld [vmem:[#allocation2 + $0x50] sm:$0xff]
        %v1112 = vld [vmem:[#allocation2 + $0x58] sm:$0xff]
        %v1113 = vld [vmem:[#allocation2 + $0x60] sm:$0xff]
        %v1114 = vld [vmem:[#allocation2 + $0x68] sm:$0xff]
        %v1115 = vld [vmem:[#allocation2 + $0x70] sm:$0xff]
        %v1116 = vld [vmem:[#allocation2 + $0x78] sm:$0xff]
        %v1117 = vld [vmem:[#allocation2 + $0x80] sm:$0xff]
        %v1118 = vld [vmem:[#allocation2 + $0x88] sm:$0xff]
        %v1119 = vld [vmem:[#allocation2 + $0x90] sm:$0xff]
        %v1120 = vld [vmem:[#allocation2 + $0x98] sm:$0xff]
        %v1121 = vld [vmem:[#allocation2 + $0xa0] sm:$0xff]
        %v1122 = vld [vmem:[#allocation2 + $0xa8] sm:$0xff]
        %v1123 = vld [vmem:[#allocation2 + $0xb0] sm:$0xff]
        %v1124 = vld [vmem:[#allocation2 + $0xb8] sm:$0xff]
        %v1125 = vld [vmem:[#allocation2 + $0xc0] sm:$0xff]
        %v1126 = vld [vmem:[#allocation2 + $0xc8] sm:$0xff]
        %v1127 = vld [vmem:[#allocation2 + $0xd0] sm:$0xff]
        %v1128 = vld [vmem:[#allocation2 + $0xd8] sm:$0xff]
        %v1129 = vld [vmem:[#allocation2 + $0xe0] sm:$0xff]
        %v1130 = vld [vmem:[#allocation2 + $0xe8] sm:$0xff]
        %v1131 = vld [vmem:[#allocation2 + $0xf0] sm:$0xff]
        %v1132 = vld [vmem:[#allocation2 + $0xf8] sm:$0xff]
        %v1133 = vld [vmem:[#allocation2 + $0x100] sm:$0xff]
        %v1134 = vld [vmem:[#allocation2 + $0x108] sm:$0xff]
        %v1135 = vld [vmem:[#allocation2 + $0x110] sm:$0xff]
        %v1136 = vld [vmem:[#allocation2 + $0x118] sm:$0xff]
        %v1137 = vld [vmem:[#allocation2 + $0x120] sm:$0xff]
        %v1138 = vld [vmem:[#allocation2 + $0x128] sm:$0xff]
        %v1139 = vld [vmem:[#allocation2 + $0x130] sm:$0xff]
        %v1140 = vld [vmem:[#allocation2 + $0x138] sm:$0xff]
        %v1141 = vld [vmem:[#allocation2 + $0x140] sm:$0xff]
        %v1142 = vld [vmem:[#allocation2 + $0x148] sm:$0xff]
        %v1143 = vld [vmem:[#allocation2 + $0x150] sm:$0xff]
        %v1144 = vld [vmem:[#allocation2 + $0x158] sm:$0xff]
        %v1145 = vld [vmem:[#allocation2 + $0x160] sm:$0xff]
        %v1146 = vld [vmem:[#allocation2 + $0x168] sm:$0xff]
        %v1147 = vld [vmem:[#allocation2 + $0x170] sm:$0xff]
        %v1148 = vld [vmem:[#allocation2 + $0x178] sm:$0xff]
        %v1149 = vld [vmem:[#allocation2 + $0x180] sm:$0xff]
        %v1150 = vld [vmem:[#allocation2 + $0x188] sm:$0xff]
        %v1151 = vld [vmem:[#allocation2 + $0x190] sm:$0xff]
        %v1152 = vld [vmem:[#allocation2 + $0x198] sm:$0xff]
        %v1153 = vld [vmem:[#allocation2 + $0x1a0] sm:$0xff]
        %v1154 = vld [vmem:[#allocation2 + $0x1a8] sm:$0xff]
        %v1155 = vld [vmem:[#allocation2 + $0x1b0] sm:$0xff]
        %v1156 = vld [vmem:[#allocation2 + $0x1b8] sm:$0xff]
        %v1157 = vld [vmem:[#allocation2 + $0x1c0] sm:$0xff]
        %v1158 = vld [vmem:[#allocation2 + $0x1c8] sm:$0xff]
        %v1159 = vld [vmem:[#allocation2 + $0x1d0] sm:$0xff]
        %v1160 = vld [vmem:[#allocation2 + $0x1d8] sm:$0xff]
        %v1161 = vld [vmem:[#allocation2 + $0x1e0] sm:$0xff]
        %v1162 = vld [vmem:[#allocation2 + $0x1e8] sm:$0xff]
        %v1163 = vld [vmem:[#allocation2 + $0x1f0] sm:$0xff]
        %v1164 = vld [vmem:[#allocation2 + $0x1f8] sm:$0xff]
        %v1165 = vmul.f32 %v1101, %v1101
        %v1166 = vmul.f32 %v1102, %v1102
        %v1167 = vmul.f32 %v1103, %v1103
        %v1168 = vmul.f32 %v1104, %v1104
        %v1169 = vmul.f32 %v1105, %v1105
        %v1170 = vmul.f32 %v1106, %v1106
        %v1171 = vmul.f32 %v1107, %v1107
        %v1172 = vmul.f32 %v1108, %v1108
        %v1173 = vmul.f32 %v1109, %v1109
        %v1174 = vmul.f32 %v1110, %v1110
        %v1175 = vmul.f32 %v1111, %v1111
        %v1176 = vmul.f32 %v1112, %v1112
        %v1177 = vmul.f32 %v1113, %v1113
        %v1178 = vmul.f32 %v1114, %v1114
        %v1179 = vmul.f32 %v1115, %v1115
        %v1180 = vmul.f32 %v1116, %v1116
        %v1181 = vmul.f32 %v1117, %v1117
        %v1182 = vmul.f32 %v1118, %v1118
        %v1183 = vmul.f32 %v1119, %v1119
        %v1184 = vmul.f32 %v1120, %v1120
        %v1185 = vmul.f32 %v1121, %v1121
        %v1186 = vmul.f32 %v1122, %v1122
        %v1187 = vmul.f32 %v1123, %v1123
        %v1188 = vmul.f32 %v1124, %v1124
        %v1189 = vmul.f32 %v1125, %v1125
        %v1190 = vmul.f32 %v1126, %v1126
        %v1191 = vmul.f32 %v1127, %v1127
        %v1192 = vmul.f32 %v1128, %v1128
        %v1193 = vmul.f32 %v1129, %v1129
        %v1194 = vmul.f32 %v1130, %v1130
        %v1195 = vmul.f32 %v1131, %v1131
        %v1196 = vmul.f32 %v1132, %v1132
        %v1197 = vmul.f32 %v1133, %v1133
        %v1198 = vmul.f32 %v1134, %v1134
        %v1199 = vmul.f32 %v1135, %v1135
        %v1200 = vmul.f32 %v1136, %v1136
        %v1201 = vmul.f32 %v1137, %v1137
        %v1202 = vmul.f32 %v1138, %v1138
        %v1203 = vmul.f32 %v1139, %v1139
        %v1204 = vmul.f32 %v1140, %v1140
        %v1205 = vmul.f32 %v1141, %v1141
        %v1206 = vmul.f32 %v1142, %v1142
        %v1207 = vmul.f32 %v1143, %v1143
        %v1208 = vmul.f32 %v1144, %v1144
        %v1209 = vmul.f32 %v1145, %v1145
        %v1210 = vmul.f32 %v1146, %v1146
        %v1211 = vmul.f32 %v1147, %v1147
        %v1212 = vmul.f32 %v1148, %v1148
        %v1213 = vmul.f32 %v1149, %v1149
        %v1214 = vmul.f32 %v1150, %v1150
        %v1215 = vmul.f32 %v1151, %v1151
        %v1216 = vmul.f32 %v1152, %v1152
        %v1217 = vmul.f32 %v1153, %v1153
        %v1218 = vmul.f32 %v1154, %v1154
        %v1219 = vmul.f32 %v1155, %v1155
        %v1220 = vmul.f32 %v1156, %v1156
        %v1221 = vmul.f32 %v1157, %v1157
        %v1222 = vmul.f32 %v1158, %v1158
        %v1223 = vmul.f32 %v1159, %v1159
        %v1224 = vmul.f32 %v1160, %v1160
        %v1225 = vmul.f32 %v1161, %v1161
        %v1226 = vmul.f32 %v1162, %v1162
        %v1227 = vmul.f32 %v1163, %v1163
        %v1228 = vmul.f32 %v1164, %v1164
        %v1229 = vadd.f32 %v1165, %v1166
        %v1230 = vadd.f32 %v1229, %v1167
        %v1231 = vadd.f32 %v1230, %v1168
        %v1232 = vadd.f32 %v1231, %v1169
        %v1233 = vadd.f32 %v1232, %v1170
        %v1234 = vadd.f32 %v1233, %v1171
        %v1235 = vadd.f32 %v1234, %v1172
        %1236 = vadd.xlane.f32.xlu0 %v1235
        %v1237 = vpop.xlane.xlu0 %1236
        %v1238 = vadd.f32 %v1173, %v1174
        %v1239 = vadd.f32 %v1238, %v1175
        %v1240 = vadd.f32 %v1239, %v1176
        %v1241 = vadd.f32 %v1240, %v1177
        %v1242 = vadd.f32 %v1241, %v1178
        %v1243 = vadd.f32 %v1242, %v1179
        %v1244 = vadd.f32 %v1243, %v1180
        %1245 = vadd.xlane.f32.xlu0 %v1244
        %v1246 = vpop.xlane.xlu0 %1245
        %v1247 = vadd.f32 %v1181, %v1182
        %v1248 = vadd.f32 %v1247, %v1183
        %v1249 = vadd.f32 %v1248, %v1184
        %v1250 = vadd.f32 %v1249, %v1185
        %v1251 = vadd.f32 %v1250, %v1186
        %v1252 = vadd.f32 %v1251, %v1187
        %v1253 = vadd.f32 %v1252, %v1188
        %1254 = vadd.xlane.f32.xlu0 %v1253
        %v1255 = vpop.xlane.xlu0 %1254
        %v1256 = vadd.f32 %v1189, %v1190
        %v1257 = vadd.f32 %v1256, %v1191
        %v1258 = vadd.f32 %v1257, %v1192
        %v1259 = vadd.f32 %v1258, %v1193
        %v1260 = vadd.f32 %v1259, %v1194
        %v1261 = vadd.f32 %v1260, %v1195
        %v1262 = vadd.f32 %v1261, %v1196
        %1263 = vadd.xlane.f32.xlu0 %v1262
        %v1264 = vpop.xlane.xlu0 %1263
        %v1265 = vadd.f32 %v1197, %v1198
        %v1266 = vadd.f32 %v1265, %v1199
        %v1267 = vadd.f32 %v1266, %v1200
        %v1268 = vadd.f32 %v1267, %v1201
        %v1269 = vadd.f32 %v1268, %v1202
        %v1270 = vadd.f32 %v1269, %v1203
        %v1271 = vadd.f32 %v1270, %v1204
        %1272 = vadd.xlane.f32.xlu0 %v1271
        %v1273 = vpop.xlane.xlu0 %1272
        %v1274 = vadd.f32 %v1205, %v1206
        %v1275 = vadd.f32 %v1274, %v1207
        %v1276 = vadd.f32 %v1275, %v1208
        %v1277 = vadd.f32 %v1276, %v1209
        %v1278 = vadd.f32 %v1277, %v1210
        %v1279 = vadd.f32 %v1278, %v1211
        %v1280 = vadd.f32 %v1279, %v1212
        %1281 = vadd.xlane.f32.xlu0 %v1280
        %v1282 = vpop.xlane.xlu0 %1281
        %v1283 = vadd.f32 %v1213, %v1214
        %v1284 = vadd.f32 %v1283, %v1215
        %v1285 = vadd.f32 %v1284, %v1216
        %v1286 = vadd.f32 %v1285, %v1217
        %v1287 = vadd.f32 %v1286, %v1218
        %v1288 = vadd.f32 %v1287, %v1219
        %v1289 = vadd.f32 %v1288, %v1220
        %1290 = vadd.xlane.f32.xlu0 %v1289
        %v1291 = vpop.xlane.xlu0 %1290
        %v1292 = vadd.f32 %v1221, %v1222
        %v1293 = vadd.f32 %v1292, %v1223
        %v1294 = vadd.f32 %v1293, %v1224
        %v1295 = vadd.f32 %v1294, %v1225
        %v1296 = vadd.f32 %v1295, %v1226
        %v1297 = vadd.f32 %v1296, %v1227
        %v1298 = vadd.f32 %v1297, %v1228
        %1299 = vadd.xlane.f32.xlu0 %v1298
        %v1300 = vpop.xlane.xlu0 %1299
        %v1301 = vmul.f32 %v1237, 0.0009765625
        %v1302 = vmul.f32 %v1246, 0.0009765625
        %v1303 = vmul.f32 %v1255, 0.0009765625
        %v1304 = vmul.f32 %v1264, 0.0009765625
        %v1305 = vmul.f32 %v1273, 0.0009765625
        %v1306 = vmul.f32 %v1282, 0.0009765625
        %v1307 = vmul.f32 %v1291, 0.0009765625
        %v1308 = vmul.f32 %v1300, 0.0009765625
        %v1309 = vld [vmem:[%s2] sm:$0xff]
        %v1310 = vld [vmem:[%s2 + $0x8] sm:$0xff]
        %v1311 = vld [vmem:[%s2 + $0x10] sm:$0xff]
        %v1312 = vld [vmem:[%s2 + $0x18] sm:$0xff]
        %v1313 = vld [vmem:[%s2 + $0x20] sm:$0xff]
        %v1314 = vld [vmem:[%s2 + $0x28] sm:$0xff]
        %v1315 = vld [vmem:[%s2 + $0x30] sm:$0xff]
        %v1316 = vld [vmem:[%s2 + $0x38] sm:$0xff]
        %v1317 = vadd.f32 %v1301, 1e-05
        %v1318 = vadd.f32 %v1302, 1e-05
        %v1319 = vadd.f32 %v1303, 1e-05
        %v1320 = vadd.f32 %v1304, 1e-05
        %v1321 = vadd.f32 %v1305, 1e-05
        %v1322 = vadd.f32 %v1306, 1e-05
        %v1323 = vadd.f32 %v1307, 1e-05
        %v1324 = vadd.f32 %v1308, 1e-05
        %v1325 = vrsqrt.pop %v1317
        %v1326 = vrsqrt.pop %v1318
        %v1327 = vrsqrt.pop %v1319
        %v1328 = vrsqrt.pop %v1320
        %v1329 = vrsqrt.pop %v1321
        %v1330 = vrsqrt.pop %v1322
        %v1331 = vrsqrt.pop %v1323
        %v1332 = vrsqrt.pop %v1324
        %v1333 = vmul.f32 %v1309, %v1325
        %v1334 = vmul.f32 %v1310, %v1326
        %v1335 = vmul.f32 %v1311, %v1327
        %v1336 = vmul.f32 %v1312, %v1328
        %v1337 = vmul.f32 %v1313, %v1329
        %v1338 = vmul.f32 %v1314, %v1330
        %v1339 = vmul.f32 %v1315, %v1331
        %v1340 = vmul.f32 %v1316, %v1332
        %1342 = vset.pattern.permute.xlu0 0
        %1343 = vperm.xlu0 %1342, %v1333
        %v1344 = vpop.permute.xlu0 %1343
        %1347 = vset.pattern.permute.xlu0 0
        %1348 = vperm.xlu0 %1347, %v1334
        %v1349 = vpop.permute.xlu0 %1348
        %1352 = vset.pattern.permute.xlu0 0
        %1353 = vperm.xlu0 %1352, %v1335
        %v1354 = vpop.permute.xlu0 %1353
        %1357 = vset.pattern.permute.xlu0 0
        %1358 = vperm.xlu0 %1357, %v1336
        %v1359 = vpop.permute.xlu0 %1358
        %1362 = vset.pattern.permute.xlu0 0
        %1363 = vperm.xlu0 %1362, %v1337
        %v1364 = vpop.permute.xlu0 %1363
        %1367 = vset.pattern.permute.xlu0 0
        %1368 = vperm.xlu0 %1367, %v1338
        %v1369 = vpop.permute.xlu0 %1368
        %1372 = vset.pattern.permute.xlu0 0
        %1373 = vperm.xlu0 %1372, %v1339
        %v1374 = vpop.permute.xlu0 %1373
        %1377 = vset.pattern.permute.xlu0 0
        %1378 = vperm.xlu0 %1377, %v1340
        %v1379 = vpop.permute.xlu0 %1378
        %v1381 = vmul.f32 %v1101, %v1344
        %v1382 = vmul.f32 %v1102, %v1344
        %v1383 = vmul.f32 %v1103, %v1344
        %v1384 = vmul.f32 %v1104, %v1344
        %v1385 = vmul.f32 %v1105, %v1344
        %v1386 = vmul.f32 %v1106, %v1344
        %v1387 = vmul.f32 %v1107, %v1344
        %v1388 = vmul.f32 %v1108, %v1344
        %v1389 = vmul.f32 %v1109, %v1349
        %v1390 = vmul.f32 %v1110, %v1349
        %v1391 = vmul.f32 %v1111, %v1349
        %v1392 = vmul.f32 %v1112, %v1349
        %v1393 = vmul.f32 %v1113, %v1349
        %v1394 = vmul.f32 %v1114, %v1349
        %v1395 = vmul.f32 %v1115, %v1349
        %v1396 = vmul.f32 %v1116, %v1349
        %v1397 = vmul.f32 %v1117, %v1354
        %v1398 = vmul.f32 %v1118, %v1354
        %v1399 = vmul.f32 %v1119, %v1354
        %v1400 = vmul.f32 %v1120, %v1354
        %v1401 = vmul.f32 %v1121, %v1354
        %v1402 = vmul.f32 %v1122, %v1354
        %v1403 = vmul.f32 %v1123, %v1354
        %v1404 = vmul.f32 %v1124, %v1354
        %v1405 = vmul.f32 %v1125, %v1359
        %v1406 = vmul.f32 %v1126, %v1359
        %v1407 = vmul.f32 %v1127, %v1359
        %v1408 = vmul.f32 %v1128, %v1359
        %v1409 = vmul.f32 %v1129, %v1359
        %v1410 = vmul.f32 %v1130, %v1359
        %v1411 = vmul.f32 %v1131, %v1359
        %v1412 = vmul.f32 %v1132, %v1359
        %v1413 = vmul.f32 %v1133, %v1364
        %v1414 = vmul.f32 %v1134, %v1364
        %v1415 = vmul.f32 %v1135, %v1364
        %v1416 = vmul.f32 %v1136, %v1364
        %v1417 = vmul.f32 %v1137, %v1364
        %v1418 = vmul.f32 %v1138, %v1364
        %v1419 = vmul.f32 %v1139, %v1364
        %v1420 = vmul.f32 %v1140, %v1364
        %v1421 = vmul.f32 %v1141, %v1369
        %v1422 = vmul.f32 %v1142, %v1369
        %v1423 = vmul.f32 %v1143, %v1369
        %v1424 = vmul.f32 %v1144, %v1369
        %v1425 = vmul.f32 %v1145, %v1369
        %v1426 = vmul.f32 %v1146, %v1369
        %v1427 = vmul.f32 %v1147, %v1369
        %v1428 = vmul.f32 %v1148, %v1369
        %v1429 = vmul.f32 %v1149, %v1374
        %v1430 = vmul.f32 %v1150, %v1374
        %v1431 = vmul.f32 %v1151, %v1374
        %v1432 = vmul.f32 %v1152, %v1374
        %v1433 = vmul.f32 %v1153, %v1374
        %v1434 = vmul.f32 %v1154, %v1374
        %v1435 = vmul.f32 %v1155, %v1374
        %v1436 = vmul.f32 %v1156, %v1374
        %v1437 = vmul.f32 %v1157, %v1379
        %v1438 = vmul.f32 %v1158, %v1379
        %v1439 = vmul.f32 %v1159, %v1379
        %v1440 = vmul.f32 %v1160, %v1379
        %v1441 = vmul.f32 %v1161, %v1379
        %v1442 = vmul.f32 %v1162, %v1379
        %v1443 = vmul.f32 %v1163, %v1379
        %v1444 = vmul.f32 %v1164, %v1379
        %v1445 = vld [vmem:[%s3] sm:$0xff]
        %v1446 = vld [vmem:[%s3 + $0x8] sm:$0xff]
        %v1447 = vld [vmem:[%s3 + $0x10] sm:$0xff]
        %v1448 = vld [vmem:[%s3 + $0x18] sm:$0xff]
        %v1449 = vld [vmem:[%s3 + $0x20] sm:$0xff]
        %v1450 = vld [vmem:[%s3 + $0x28] sm:$0xff]
        %v1451 = vld [vmem:[%s3 + $0x30] sm:$0xff]
        %v1452 = vld [vmem:[%s3 + $0x38] sm:$0xff]
        %1454 = vset.pattern.permute.xlu0 0
        %1455 = vperm.xlu0 %1454, %v1445
        %v1456 = vpop.permute.xlu0 %1455
        %1459 = vset.pattern.permute.xlu0 0
        %1460 = vperm.xlu0 %1459, %v1446
        %v1461 = vpop.permute.xlu0 %1460
        %1464 = vset.pattern.permute.xlu0 0
        %1465 = vperm.xlu0 %1464, %v1447
        %v1466 = vpop.permute.xlu0 %1465
        %1469 = vset.pattern.permute.xlu0 0
        %1470 = vperm.xlu0 %1469, %v1448
        %v1471 = vpop.permute.xlu0 %1470
        %1474 = vset.pattern.permute.xlu0 0
        %1475 = vperm.xlu0 %1474, %v1449
        %v1476 = vpop.permute.xlu0 %1475
        %1479 = vset.pattern.permute.xlu0 0
        %1480 = vperm.xlu0 %1479, %v1450
        %v1481 = vpop.permute.xlu0 %1480
        %1484 = vset.pattern.permute.xlu0 0
        %1485 = vperm.xlu0 %1484, %v1451
        %v1486 = vpop.permute.xlu0 %1485
        %1489 = vset.pattern.permute.xlu0 0
        %1490 = vperm.xlu0 %1489, %v1452
        %v1491 = vpop.permute.xlu0 %1490
        %v1493 = vadd.f32 %v1381, %v1456
        %v1494 = vadd.f32 %v1382, %v1456
        %v1495 = vadd.f32 %v1383, %v1456
        %v1496 = vadd.f32 %v1384, %v1456
        %v1497 = vadd.f32 %v1385, %v1456
        %v1498 = vadd.f32 %v1386, %v1456
        %v1499 = vadd.f32 %v1387, %v1456
        %v1500 = vadd.f32 %v1388, %v1456
        %v1501 = vadd.f32 %v1389, %v1461
        %v1502 = vadd.f32 %v1390, %v1461
        %v1503 = vadd.f32 %v1391, %v1461
        %v1504 = vadd.f32 %v1392, %v1461
        %v1505 = vadd.f32 %v1393, %v1461
        %v1506 = vadd.f32 %v1394, %v1461
        %v1507 = vadd.f32 %v1395, %v1461
        %v1508 = vadd.f32 %v1396, %v1461
        %v1509 = vadd.f32 %v1397, %v1466
        %v1510 = vadd.f32 %v1398, %v1466
        %v1511 = vadd.f32 %v1399, %v1466
        %v1512 = vadd.f32 %v1400, %v1466
        %v1513 = vadd.f32 %v1401, %v1466
        %v1514 = vadd.f32 %v1402, %v1466
        %v1515 = vadd.f32 %v1403, %v1466
        %v1516 = vadd.f32 %v1404, %v1466
        %v1517 = vadd.f32 %v1405, %v1471
        %v1518 = vadd.f32 %v1406, %v1471
        %v1519 = vadd.f32 %v1407, %v1471
        %v1520 = vadd.f32 %v1408, %v1471
        %v1521 = vadd.f32 %v1409, %v1471
        %v1522 = vadd.f32 %v1410, %v1471
        %v1523 = vadd.f32 %v1411, %v1471
        %v1524 = vadd.f32 %v1412, %v1471
        %v1525 = vadd.f32 %v1413, %v1476
        %v1526 = vadd.f32 %v1414, %v1476
        %v1527 = vadd.f32 %v1415, %v1476
        %v1528 = vadd.f32 %v1416, %v1476
        %v1529 = vadd.f32 %v1417, %v1476
        %v1530 = vadd.f32 %v1418, %v1476
        %v1531 = vadd.f32 %v1419, %v1476
        %v1532 = vadd.f32 %v1420, %v1476
        %v1533 = vadd.f32 %v1421, %v1481
        %v1534 = vadd.f32 %v1422, %v1481
        %v1535 = vadd.f32 %v1423, %v1481
        %v1536 = vadd.f32 %v1424, %v1481
        %v1537 = vadd.f32 %v1425, %v1481
        %v1538 = vadd.f32 %v1426, %v1481
        %v1539 = vadd.f32 %v1427, %v1481
        %v1540 = vadd.f32 %v1428, %v1481
        %v1541 = vadd.f32 %v1429, %v1486
        %v1542 = vadd.f32 %v1430, %v1486
        %v1543 = vadd.f32 %v1431, %v1486
        %v1544 = vadd.f32 %v1432, %v1486
        %v1545 = vadd.f32 %v1433, %v1486
        %v1546 = vadd.f32 %v1434, %v1486
        %v1547 = vadd.f32 %v1435, %v1486
        %v1548 = vadd.f32 %v1436, %v1486
        %v1549 = vadd.f32 %v1437, %v1491
        %v1550 = vadd.f32 %v1438, %v1491
        %v1551 = vadd.f32 %v1439, %v1491
        %v1552 = vadd.f32 %v1440, %v1491
        %v1553 = vadd.f32 %v1441, %v1491
        %v1554 = vadd.f32 %v1442, %v1491
        %v1555 = vadd.f32 %v1443, %v1491
        %v1556 = vadd.f32 %v1444, %v1491
        %v1557 = vmax.f32 %v1493, 0.0
        %v1558 = vmax.f32 %v1494, 0.0
        %v1559 = vmax.f32 %v1495, 0.0
        %v1560 = vmax.f32 %v1496, 0.0
        %v1561 = vmax.f32 %v1497, 0.0
        %v1562 = vmax.f32 %v1498, 0.0
        %v1563 = vmax.f32 %v1499, 0.0
        %v1564 = vmax.f32 %v1500, 0.0
        %v1565 = vmax.f32 %v1501, 0.0
        %v1566 = vmax.f32 %v1502, 0.0
        %v1567 = vmax.f32 %v1503, 0.0
        %v1568 = vmax.f32 %v1504, 0.0
        %v1569 = vmax.f32 %v1505, 0.0
        %v1570 = vmax.f32 %v1506, 0.0
        %v1571 = vmax.f32 %v1507, 0.0
        %v1572 = vmax.f32 %v1508, 0.0
        %v1573 = vmax.f32 %v1509, 0.0
        %v1574 = vmax.f32 %v1510, 0.0
        %v1575 = vmax.f32 %v1511, 0.0
        %v1576 = vmax.f32 %v1512, 0.0
        %v1577 = vmax.f32 %v1513, 0.0
        %v1578 = vmax.f32 %v1514, 0.0
        %v1579 = vmax.f32 %v1515, 0.0
        %v1580 = vmax.f32 %v1516, 0.0
        %v1581 = vmax.f32 %v1517, 0.0
        %v1582 = vmax.f32 %v1518, 0.0
        %v1583 = vmax.f32 %v1519, 0.0
        %v1584 = vmax.f32 %v1520, 0.0
        %v1585 = vmax.f32 %v1521, 0.0
        %v1586 = vmax.f32 %v1522, 0.0
        %v1587 = vmax.f32 %v1523, 0.0
        %v1588 = vmax.f32 %v1524, 0.0
        %v1589 = vmax.f32 %v1525, 0.0
        %v1590 = vmax.f32 %v1526, 0.0
        %v1591 = vmax.f32 %v1527, 0.0
        %v1592 = vmax.f32 %v1528, 0.0
        %v1593 = vmax.f32 %v1529, 0.0
        %v1594 = vmax.f32 %v1530, 0.0
        %v1595 = vmax.f32 %v1531, 0.0
        %v1596 = vmax.f32 %v1532, 0.0
        %v1597 = vmax.f32 %v1533, 0.0
        %v1598 = vmax.f32 %v1534, 0.0
        %v1599 = vmax.f32 %v1535, 0.0
        %v1600 = vmax.f32 %v1536, 0.0
        %v1601 = vmax.f32 %v1537, 0.0
        %v1602 = vmax.f32 %v1538, 0.0
        %v1603 = vmax.f32 %v1539, 0.0
        %v1604 = vmax.f32 %v1540, 0.0
        %v1605 = vmax.f32 %v1541, 0.0
        %v1606 = vmax.f32 %v1542, 0.0
        %v1607 = vmax.f32 %v1543, 0.0
        %v1608 = vmax.f32 %v1544, 0.0
        %v1609 = vmax.f32 %v1545, 0.0
        %v1610 = vmax.f32 %v1546, 0.0
        %v1611 = vmax.f32 %v1547, 0.0
        %v1612 = vmax.f32 %v1548, 0.0
        %v1613 = vmax.f32 %v1549, 0.0
        %v1614 = vmax.f32 %v1550, 0.0
        %v1615 = vmax.f32 %v1551, 0.0
        %v1616 = vmax.f32 %v1552, 0.0
        %v1617 = vmax.f32 %v1553, 0.0
        %v1618 = vmax.f32 %v1554, 0.0
        %v1619 = vmax.f32 %v1555, 0.0
        %v1620 = vmax.f32 %v1556, 0.0
        %1621 = vst [vmem:[%s215] sm:$0xff] %v1557
        %1622 = vst [vmem:[%s215 + $0x8] sm:$0xff] %v1558
        %1623 = vst [vmem:[%s215 + $0x10] sm:$0xff] %v1559
        %1624 = vst [vmem:[%s215 + $0x18] sm:$0xff] %v1560
        %1625 = vst [vmem:[%s215 + $0x20] sm:$0xff] %v1561
        %1626 = vst [vmem:[%s215 + $0x28] sm:$0xff] %v1562
        %1627 = vst [vmem:[%s215 + $0x30] sm:$0xff] %v1563
        %1628 = vst [vmem:[%s215 + $0x38] sm:$0xff] %v1564
        %1629 = vst [vmem:[%s215 + $0x40] sm:$0xff] %v1565
        %1630 = vst [vmem:[%s215 + $0x48] sm:$0xff] %v1566
        %1631 = vst [vmem:[%s215 + $0x50] sm:$0xff] %v1567
        %1632 = vst [vmem:[%s215 + $0x58] sm:$0xff] %v1568
        %1633 = vst [vmem:[%s215 + $0x60] sm:$0xff] %v1569
        %1634 = vst [vmem:[%s215 + $0x68] sm:$0xff] %v1570
        %1635 = vst [vmem:[%s215 + $0x70] sm:$0xff] %v1571
        %1636 = vst [vmem:[%s215 + $0x78] sm:$0xff] %v1572
        %1637 = vst [vmem:[%s215 + $0x80] sm:$0xff] %v1573
        %1638 = vst [vmem:[%s215 + $0x88] sm:$0xff] %v1574
        %1639 = vst [vmem:[%s215 + $0x90] sm:$0xff] %v1575
        %1640 = vst [vmem:[%s215 + $0x98] sm:$0xff] %v1576
        %1641 = vst [vmem:[%s215 + $0xa0] sm:$0xff] %v1577
        %1642 = vst [vmem:[%s215 + $0xa8] sm:$0xff] %v1578
        %1643 = vst [vmem:[%s215 + $0xb0] sm:$0xff] %v1579
        %1644 = vst [vmem:[%s215 + $0xb8] sm:$0xff] %v1580
        %1645 = vst [vmem:[%s215 + $0xc0] sm:$0xff] %v1581
        %1646 = vst [vmem:[%s215 + $0xc8] sm:$0xff] %v1582
        %1647 = vst [vmem:[%s215 + $0xd0] sm:$0xff] %v1583
        %1648 = vst [vmem:[%s215 + $0xd8] sm:$0xff] %v1584
        %1649 = vst [vmem:[%s215 + $0xe0] sm:$0xff] %v1585
        %1650 = vst [vmem:[%s215 + $0xe8] sm:$0xff] %v1586
        %1651 = vst [vmem:[%s215 + $0xf0] sm:$0xff] %v1587
        %1652 = vst [vmem:[%s215 + $0xf8] sm:$0xff] %v1588
        %1653 = vst [vmem:[%s215 + $0x100] sm:$0xff] %v1589
        %1654 = vst [vmem:[%s215 + $0x108] sm:$0xff] %v1590
        %1655 = vst [vmem:[%s215 + $0x110] sm:$0xff] %v1591
        %1656 = vst [vmem:[%s215 + $0x118] sm:$0xff] %v1592
        %1657 = vst [vmem:[%s215 + $0x120] sm:$0xff] %v1593
        %1658 = vst [vmem:[%s215 + $0x128] sm:$0xff] %v1594
        %1659 = vst [vmem:[%s215 + $0x130] sm:$0xff] %v1595
        %1660 = vst [vmem:[%s215 + $0x138] sm:$0xff] %v1596
        %1661 = vst [vmem:[%s215 + $0x140] sm:$0xff] %v1597
        %1662 = vst [vmem:[%s215 + $0x148] sm:$0xff] %v1598
        %1663 = vst [vmem:[%s215 + $0x150] sm:$0xff] %v1599
        %1664 = vst [vmem:[%s215 + $0x158] sm:$0xff] %v1600
        %1665 = vst [vmem:[%s215 + $0x160] sm:$0xff] %v1601
        %1666 = vst [vmem:[%s215 + $0x168] sm:$0xff] %v1602
        %1667 = vst [vmem:[%s215 + $0x170] sm:$0xff] %v1603
        %1668 = vst [vmem:[%s215 + $0x178] sm:$0xff] %v1604
        %1669 = vst [vmem:[%s215 + $0x180] sm:$0xff] %v1605
        %1670 = vst [vmem:[%s215 + $0x188] sm:$0xff] %v1606
        %1671 = vst [vmem:[%s215 + $0x190] sm:$0xff] %v1607
        %1672 = vst [vmem:[%s215 + $0x198] sm:$0xff] %v1608
        %1673 = vst [vmem:[%s215 + $0x1a0] sm:$0xff] %v1609
        %1674 = vst [vmem:[%s215 + $0x1a8] sm:$0xff] %v1610
        %1675 = vst [vmem:[%s215 + $0x1b0] sm:$0xff] %v1611
        %1676 = vst [vmem:[%s215 + $0x1b8] sm:$0xff] %v1612
        %1677 = vst [vmem:[%s215 + $0x1c0] sm:$0xff] %v1613
        %1678 = vst [vmem:[%s215 + $0x1c8] sm:$0xff] %v1614
        %1679 = vst [vmem:[%s215 + $0x1d0] sm:$0xff] %v1615
        %1680 = vst [vmem:[%s215 + $0x1d8] sm:$0xff] %v1616
        %1681 = vst [vmem:[%s215 + $0x1e0] sm:$0xff] %v1617
        %1682 = vst [vmem:[%s215 + $0x1e8] sm:$0xff] %v1618
        %1683 = vst [vmem:[%s215 + $0x1f0] sm:$0xff] %v1619
        %1684 = vst [vmem:[%s215 + $0x1f8] sm:$0xff] %v1620
        %s1685 = sand.u32 %s118, 1
        %s1686 = scalar_lea.sflag [#allocation5], %s1685
        %s1687 = sand.u32 %s118, 1
        %s1688 = smul.addr %s1687, 512
        %s1689 = scalar_lea.vmem [#allocation6], %s1688
        // Predicated region
        $region41: #{tpu_custom_call.1} parent=35 // pred_check
          %p1690 = pneg %p128
        $region42: #{tpu_custom_call.1} parent=35 // pred_check_branch
          %1692 = sbr.rel (%p1690) target = $region44
        $region43: #{tpu_custom_call.1} parent=35 // pred_region
          %s1694 = ssub.s32 8192, 8192
          %1695 = vsyncadd %s1686, %s1694
          %s1696 = smul.addr %s21, 64
          %s1697 = smul.addr %s1696, 128
          %s1698 = scalar_lea.hbm %s4, %s1697
          %s1699 = sshll.u32 %s1689, 4
          %s1700 = int_to_ptr.vmem [resolvable:$true] %s1699
          %1705 = dma.vmem_to_hbm [thread:$0]  %s1700, 8192, %s1698, %s1686, 1024, 1024, 64
        $region44: #{tpu_custom_call.1} parent=35 // pred_fallthru
          _
      $region36: #{tpu_custom_call.1} parent=5 // pred_fallthru
        _
      %p1706 = scmp.le.s32.totalorder 2, %s16
      // Predicated region
      $region45: #{tpu_custom_call.1} parent=5 // pred_check
        %p1707 = pneg %p1706
      $region46: #{tpu_custom_call.1} parent=5 // pred_check_branch
        %1709 = sbr.rel (%p1707) target = $region48
      $region47: #{tpu_custom_call.1} parent=5 // pred_region
        %s1710 = ssub.s32 %s16, 2
        // Predicated region
        $region49: #{tpu_custom_call.1} parent=47 // pred_check
          %p1711 = pneg %p134
        $region50: #{tpu_custom_call.1} parent=47 // pred_check_branch
          %1713 = sbr.rel (%p1711) target = $region52
        $region51: #{tpu_custom_call.1} parent=47 // pred_region
          %s1714 = sand.u32 %s119, 1
          %s1715 = scalar_lea.sflag [#allocation5], %s1714
          %s1716 = sand.u32 %s119, 1
          %s1717 = smul.addr %s1716, 512
          %s1718 = scalar_lea.vmem [#allocation6], %s1717
          %1719 = dma.done %s1715, 8192
        $region52: #{tpu_custom_call.1} parent=47 // pred_fallthru
          _
      $region48: #{tpu_custom_call.1} parent=5 // pred_fallthru
        _
    $region6: #{tpu_custom_call.1} parent=1 // loop_footer
      %s20 = sadd.s32 1, %s16
    $region7: #{tpu_custom_call.1} parent=1 // loop_footer_branch
      %15 = sbr.rel target = $region3
    $region8: #{tpu_custom_call.1} parent=1 // loop_exit
      _
    %1720 = vsyncpa [#allocation4], 1
    %s1721 = scalar_lea.sflag [#allocation4], 1
    %1722 = vsyncpa %s1721, 1
    %1723 = vsyncpa [#allocation5], 1
    %s1724 = scalar_lea.sflag [#allocation5], 1
    %1725 = vsyncpa %s1724, 1

</llo_original>
